<compile_context>
chip_gen: v7x
topology: tpu7x:2x2x1
jax: 0.10.0
libtpu: 0.0.40
codegen_flags: <defaults>
</compile_context>

<pallas_src>
import jax
import jax.numpy as jnp
from jax import lax
from jax.experimental import pallas as pl
from jax.experimental.pallas import tpu as pltpu

DEPTH = 3          # chemprop default message-passing depth
_LANE = 128        # lane width   -> last-dim padding target
_SUBLANE = 8       # f32 sublanes -> row-dim padding target


def _round_up(x, m):
    return ((x + m - 1) // m) * m


def chemprop_fingerprint_kernel(
    f_atoms_ref, f_bonds_ref, a2b_ref, scope_ref, src_ref, rev_ref,
    w_i_ref, w_h_ref, w_o_a_ref, w_o_m_ref, b_o_ref, w_ffn_ref, b_ffn_ref,
    out_ref,
    inp_ref, msg_ref, a_msg_ref, new_msg_ref,
):
    f32 = jnp.float32
    bf16 = jnp.bfloat16
    n_blocks = msg_ref.shape[0] // _SUBLANE   # padded bond rows / 8 (static)

    # W_i (bias-free) + ReLU.  bf16 operands, f32 accumulation; epilogue in f32.
    inp_ref[...] = jnp.dot(f_bonds_ref[...], w_i_ref[...], preferred_element_type=f32)
    msg_ref[...] = jnp.maximum(inp_ref[...], 0.0)

    # new_msg[b] = a_msg[src[b]] - msg[rev[b]] : 8-row blocked gather.  Indices live in
    # SMEM; per block we do single-row loads, pack them into full (8, H) tiles and emit
    # one aligned, unmasked store (no per-row masked vst, no full unroll).
    def gather_block(g, carry):
        base = pl.multiple_of(g * _SUBLANE, _SUBLANE)
        src_rows = []
        rev_rows = []
        for k in range(_SUBLANE):
            s = src_ref[base + k]
            r = rev_ref[base + k]
            src_rows.append(a_msg_ref[pl.ds(s, 1), :])
            rev_rows.append(msg_ref[pl.ds(r, 1), :])
        new_msg_ref[pl.ds(base, _SUBLANE), :] = (
            jnp.concatenate(src_rows, axis=0) - jnp.concatenate(rev_rows, axis=0))
        return carry

    # Directed message passing (dropout = identity in eval mode).
    for _ in range(DEPTH - 1):
        # Per-atom sum of incoming bond messages: true reduction -> MXU matmul with
        # bf16 operands (a2b ref is bf16, 0/1 exact) and f32 accumulation.
        a_msg_ref[...] = jnp.dot(a2b_ref[...], msg_ref[...].astype(bf16),
                                 preferred_element_type=f32)

        lax.fori_loop(0, n_blocks, gather_block, 0, unroll=False)

        msg_ref[...] = jnp.maximum(
            inp_ref[...] + jnp.dot(new_msg_ref[...].astype(bf16), w_h_ref[...],
                                   preferred_element_type=f32),
            0.0)

    # Final per-atom aggregation + atom readout:
    # atom_h = ReLU(W_o([f_atoms, a_msg]) + b_o), concat split into two matmuls.
    a_msg = jnp.dot(a2b_ref[...], msg_ref[...].astype(bf16), preferred_element_type=f32)
    atom_h = jnp.maximum(
        jnp.dot(f_atoms_ref[...], w_o_a_ref[...], preferred_element_type=f32)
        + jnp.dot(a_msg, w_o_m_ref[...], preferred_element_type=f32)
        + b_o_ref[...],
        0.0)

    # Per-molecule mean pooling (mean weights folded into `scope`, kept f32).
    mol = jnp.dot(scope_ref[...], atom_h, preferred_element_type=f32)

    # 'last_FFN' fingerprint: readout[:-1] = Dropout -> Linear -> ReLU (eval mode).
    out_ref[...] = jnp.maximum(
        jnp.dot(mol, w_ffn_ref[...], preferred_element_type=f32) + b_ffn_ref[...],
        0.0).astype(out_ref.dtype)


def chemprop_fingerprint(f_atoms, f_bonds, a2b, scope, src, rev_idx,
                         w_i, w_h, w_o, b_o, w_ffn, b_ffn):
    n_atoms, atom_fdim = f_atoms.shape
    n_bonds, bond_fdim = f_bonds.shape
    n_mols = scope.shape[0]
    hidden = w_i.shape[1]
    ffn_hidden = w_ffn.shape[1]

    # Lane/sublane aligned sizes: every matmul / store is lane-dense, zero padding is
    # numerically exact (padded a2b/scope columns are zero, so garbage in padded msg
    # rows never reaches the readout).
    ap = _round_up(n_atoms, _SUBLANE)
    bp = _round_up(n_bonds, _SUBLANE)
    mp = _round_up(n_mols, _SUBLANE)
    fap = _round_up(atom_fdim, _LANE)
    fbp = _round_up(bond_fdim, _LANE)
    hp = _round_up(hidden, _LANE)
    ffp = _round_up(ffn_hidden, _LANE)

    pad2 = lambda x, r, c: jnp.pad(x, ((0, r - x.shape[0]), (0, c - x.shape[1])))
    pad1 = lambda x, n: jnp.pad(x, (0, n - x.shape[0]))

    w_o_a, w_o_m = w_o[:atom_fdim], w_o[atom_fdim:]

    args = (
        pad2(f_atoms, ap, fap).astype(jnp.float32),
        pad2(f_bonds, bp, fbp).astype(jnp.bfloat16),   # bf16 MXU operand
        pad2(a2b, ap, bp).astype(jnp.bfloat16),        # 0/1 incidence: exact in bf16
        pad2(scope, mp, ap).astype(jnp.float32),       # 1/a_size mean weights: keep f32
        pad1(src.astype(jnp.int32), bp),               # padded bonds gather row 0 (harmless)
        pad1(rev_idx.astype(jnp.int32), bp),
        pad2(w_i, fbp, hp).astype(jnp.bfloat16),       # bf16 MXU operand
        pad2(w_h, hp, hp).astype(jnp.bfloat16),        # bf16 MXU operand
        pad2(w_o_a, fap, hp).astype(jnp.float32),
        pad2(w_o_m, hp, hp).astype(jnp.float32),
        pad2(b_o, 1, hp).astype(jnp.float32),
        pad2(w_ffn, hp, ffp).astype(jnp.float32),
        pad2(b_ffn, 1, ffp).astype(jnp.float32),
    )

    vmem = pl.BlockSpec(memory_space=pltpu.MemorySpace.VMEM)
    smem = pl.BlockSpec(memory_space=pltpu.MemorySpace.SMEM)
    in_specs = [vmem, vmem, vmem, vmem, smem, smem] + [vmem] * 7

    scratch_shapes = [
        pltpu.VMEM((bp, hp), jnp.float32),   # inp (W_i output, reused each depth step)
        pltpu.VMEM((bp, hp), jnp.float32),   # msg
        pltpu.VMEM((ap, hp), jnp.float32),   # a_msg
        pltpu.VMEM((bp, hp), jnp.float32),   # new_msg
    ]

    # VMEM budget: actual padded footprint + headroom, capped at 0.85x physical VMEM of
    # the current generation (no 2x multiplier — nothing is double-buffered w/o a grid).
    nbytes = sum(int(a.size) * a.dtype.itemsize for a in args)
    nbytes += (3 * bp + ap) * hp * 4           # f32 scratch
    nbytes += mp * ffp * 4                     # output
    try:
        vmem_cap = int(pltpu.get_tpu_info().vmem_capacity_bytes)
    except Exception:
        vmem_cap = 64 * 1024 * 1024            # conservative (v7x per-TC VMEM)
    vmem_limit = int(min(max(nbytes + (4 << 20), 16 << 20), 0.85 * vmem_cap))

    out = pl.pallas_call(
        chemprop_fingerprint_kernel,
        out_shape=jax.ShapeDtypeStruct((mp, ffp), jnp.float32),
        in_specs=in_specs,
        out_specs=vmem,
        scratch_shapes=scratch_shapes,
        compiler_params=pltpu.CompilerParams(vmem_limit_bytes=vmem_limit),
    )(*args)

    return out[:n_mols, :ffn_hidden]


def _reference(f_atoms, f_bonds, a2b, scope, src, rev_idx,
               w_i, w_h, w_o, b_o, w_ffn, b_ffn):
    hi = jax.lax.Precision.HIGHEST
    inp = jnp.dot(f_bonds, w_i, precision=hi)
    msg = jnp.maximum(inp, 0.0)
    for _ in range(DEPTH - 1):
        a_msg = jnp.dot(a2b, msg, precision=hi)
        msg = jnp.maximum(
            inp + jnp.dot(a_msg[src] - msg[rev_idx], w_h, precision=hi), 0.0)
    a_msg = jnp.dot(a2b, msg, precision=hi)
    atom_h = jnp.maximum(
        jnp.dot(jnp.concatenate([f_atoms, a_msg], axis=1), w_o, precision=hi) + b_o,
        0.0)
    mol = jnp.dot(scope, atom_h, precision=hi)
    return jnp.maximum(jnp.dot(mol, w_ffn, precision=hi) + b_ffn, 0.0)


if __name__ == "__main__":
    key = jax.random.PRNGKey(0)

    # Small synthetic batch: 2 path molecules with 4 atoms each.
    n_mols, atoms_per_mol = 2, 4
    n_atoms = n_mols * atoms_per_mol
    atom_fdim, bond_only_fdim = 33, 14        # chemprop-like, deliberately not lane multiples
    bond_fdim = atom_fdim + bond_only_fdim    # f_bond = [f_atom(src), bond feats]
    hidden, ffn_hidden = 48, 40

    # Directed bonds: 0-1-2-3 and 4-5-6-7, both directions (chemprop stores pairs).
    bonds = []
    for m in range(n_mols):
        off = m * atoms_per_mol
        for a in range(atoms_per_mol - 1):
            bonds.append((off + a, off + a + 1))
            bonds.append((off + a + 1, off + a))
    n_bonds = len(bonds)
    src = jnp.array([b[0] for b in bonds], dtype=jnp.int32)                            # b2a
    dst = jnp.array([b[1] for b in bonds], dtype=jnp.int32)
    rev_idx = jnp.array([bonds.index((d, s)) for (s, d) in bonds], dtype=jnp.int32)    # b2revb

    # Graph glue: incoming-bond incidence (true reduction) and mean-readout weights.
    a2b = (dst[None, :] == jnp.arange(n_atoms)[:, None]).astype(jnp.float32)
    mol_of_atom = jnp.arange(n_atoms) // atoms_per_mol
    scope = (mol_of_atom[None, :] == jnp.arange(n_mols)[:, None]).astype(jnp.float32)
    scope = scope / jnp.float32(atoms_per_mol)   # mean readout

    # Deterministic synthetic features + weights (shapes per chemprop __init__).
    keys = jax.random.split(key, 8)
    f_atoms = jax.random.normal(keys[0], (n_atoms, atom_fdim), jnp.float32)
    bond_feats = jax.random.normal(keys[1], (n_bonds, bond_only_fdim), jnp.float32)
    f_bonds = jnp.concatenate([f_atoms[src], bond_feats], axis=1)

    sc = jnp.float32(0.1)
    w_i = sc * jax.random.normal(keys[2], (bond_fdim, hidden), jnp.float32)
    w_h = sc * jax.random.normal(keys[3], (hidden, hidden), jnp.float32)
    w_o = sc * jax.random.normal(keys[4], (atom_fdim + hidden, hidden), jnp.float32)
    b_o = sc * jax.random.normal(keys[5], (1, hidden), jnp.float32)
    w_ffn = sc * jax.random.normal(keys[6], (hidden, ffn_hidden), jnp.float32)
    b_ffn = sc * jax.random.normal(keys[7], (1, ffn_hidden), jnp.float32)

    out = chemprop_fingerprint(f_atoms, f_bonds, a2b, scope, src, rev_idx,
                               w_i, w_h, w_o, b_o, w_ffn, b_ffn)
    out = jax.block_until_ready(out)
    assert out.shape == (n_mols, ffn_hidden) and out.dtype == jnp.float32

    # Sanity check against a pure-JAX f32 reference of the same eval-mode forward pass
    # (kernel uses bf16 MXU operands with f32 accumulation; tolerance has headroom).
    ref = _reference(f_atoms, f_bonds, a2b, scope, src, rev_idx,
                     w_i, w_h, w_o, b_o, w_ffn, b_ffn)
    max_err = float(jnp.max(jnp.abs(out - ref)))
    assert max_err < 5e-2, f"kernel/reference mismatch: max|err|={max_err}"

    print("KERNEL_OK")
</pallas_src>

<mosaic_0001>
module attributes {stable_mosaic.version = 11 : i64} {
  func.func @chemprop_fingerprint_kernel(%arg0: memref<8x128xf32, #tpu.memory_space<vmem>>, %arg1: memref<16x128xbf16, #tpu.memory_space<vmem>>, %arg2: memref<8x16xbf16, #tpu.memory_space<vmem>>, %arg3: memref<8x8xf32, #tpu.memory_space<vmem>>, %arg4: memref<16xi32, #tpu.memory_space<smem>>, %arg5: memref<16xi32, #tpu.memory_space<smem>>, %arg6: memref<128x128xbf16, #tpu.memory_space<vmem>>, %arg7: memref<128x128xbf16, #tpu.memory_space<vmem>>, %arg8: memref<128x128xf32, #tpu.memory_space<vmem>>, %arg9: memref<128x128xf32, #tpu.memory_space<vmem>>, %arg10: memref<1x128xf32, #tpu.memory_space<vmem>>, %arg11: memref<128x128xf32, #tpu.memory_space<vmem>>, %arg12: memref<1x128xf32, #tpu.memory_space<vmem>>, %arg13: memref<8x128xf32, #tpu.memory_space<vmem>>, %arg14: memref<16x128xf32, #tpu.memory_space<vmem>>, %arg15: memref<16x128xf32, #tpu.memory_space<vmem>>, %arg16: memref<8x128xf32, #tpu.memory_space<vmem>>, %arg17: memref<16x128xf32, #tpu.memory_space<vmem>>) attributes {dimension_semantics = [], scalar_prefetch = 0 : i64, scratch_operands = 4 : i64, tpu.core_type = #tpu.core_type<tc>} {
    %c0 = arith.constant 0 : index
    %c0_0 = arith.constant 0 : index
    %0 = vector.load %arg1[%c0, %c0_0] : memref<16x128xbf16, #tpu.memory_space<vmem>>, vector<16x128xbf16>
    %c0_1 = arith.constant 0 : index
    %c0_2 = arith.constant 0 : index
    %1 = vector.load %arg6[%c0_1, %c0_2] : memref<128x128xbf16, #tpu.memory_space<vmem>>, vector<128x128xbf16>
    %cst = arith.constant dense<0.000000e+00> : vector<16x128xf32>
    %2 = tpu.matmul %0, %1, %cst {dimension_numbers = #tpu.dot_dimension_numbers<[1], [0], [0], [1], [0, 0, 1, 1], [], []>} : vector<16x128xbf16>, vector<128x128xbf16>, vector<16x128xf32> -> vector<16x128xf32>
    %c0_3 = arith.constant 0 : index
    %c0_4 = arith.constant 0 : index
    %3 = vector.load %arg14[%c0_3, %c0_4] : memref<16x128xf32, #tpu.memory_space<vmem>>, vector<16x128xf32>
    tpu.vector_store %arg14[%c0_3, %c0_4], %2 {strides = array<i32>} : memref<16x128xf32, #tpu.memory_space<vmem>>, vector<16x128xf32>,
    %c0_5 = arith.constant 0 : index
    %c0_6 = arith.constant 0 : index
    %4 = vector.load %arg14[%c0_5, %c0_6] : memref<16x128xf32, #tpu.memory_space<vmem>>, vector<16x128xf32>
    %cst_7 = arith.constant 0.000000e+00 : f32
    %5 = vector.broadcast %cst_7 : f32 to vector<16x128xf32>
    %6 = arith.maximumf %4, %5 : vector<16x128xf32>
    %c0_8 = arith.constant 0 : index
    %c0_9 = arith.constant 0 : index
    %7 = vector.load %arg15[%c0_8, %c0_9] : memref<16x128xf32, #tpu.memory_space<vmem>>, vector<16x128xf32>
    tpu.vector_store %arg15[%c0_8, %c0_9], %6 {strides = array<i32>} : memref<16x128xf32, #tpu.memory_space<vmem>>, vector<16x128xf32>,
    %c0_10 = arith.constant 0 : index
    %c0_11 = arith.constant 0 : index
    %8 = vector.load %arg2[%c0_10, %c0_11] : memref<8x16xbf16, #tpu.memory_space<vmem>>, vector<8x16xbf16>
    %c0_12 = arith.constant 0 : index
    %c0_13 = arith.constant 0 : index
    %9 = vector.load %arg15[%c0_12, %c0_13] : memref<16x128xf32, #tpu.memory_space<vmem>>, vector<16x128xf32>
    %10 = arith.truncf %9 : vector<16x128xf32> to vector<16x128xbf16>
    %cst_14 = arith.constant dense<0.000000e+00> : vector<8x128xf32>
    %11 = tpu.matmul %8, %10, %cst_14 {dimension_numbers = #tpu.dot_dimension_numbers<[1], [0], [0], [1], [0, 0, 1, 1], [], []>} : vector<8x16xbf16>, vector<16x128xbf16>, vector<8x128xf32> -> vector<8x128xf32>
    %c0_15 = arith.constant 0 : index
    %c0_16 = arith.constant 0 : index
    %12 = vector.load %arg16[%c0_15, %c0_16] : memref<8x128xf32, #tpu.memory_space<vmem>>, vector<8x128xf32>
    tpu.vector_store %arg16[%c0_15, %c0_16], %11 {strides = array<i32>} : memref<8x128xf32, #tpu.memory_space<vmem>>, vector<8x128xf32>,
    %c0_i32 = arith.constant 0 : i32
    %c2_i32 = arith.constant 2 : i32
    %13 = arith.addi %c0_i32, %c2_i32 : i32
    %c1_i32 = arith.constant 1 : i32
    scf.for %arg18 = %c0_i32 to %13 step %c1_i32  : i32 {
      %c8_i32 = arith.constant 8 : i32
      %63 = arith.muli %arg18, %c8_i32 : i32
      %64 = tpu.assume_multiple %63, 8 : i32
      %c0_i32_76 = arith.constant 0 : i32
      %65 = arith.addi %64, %c0_i32_76 : i32
      %66 = arith.index_cast %65 : i32 to index
      %67 = memref.load %arg4[%66] : memref<16xi32, #tpu.memory_space<smem>>
      %c0_i32_77 = arith.constant 0 : i32
      %68 = arith.addi %64, %c0_i32_77 : i32
      %69 = arith.index_cast %68 : i32 to index
      %70 = memref.load %arg5[%69] : memref<16xi32, #tpu.memory_space<smem>>
      %71 = arith.index_cast %67 : i32 to index
      %c0_78 = arith.constant 0 : index
      %72 = vector.load %arg16[%71, %c0_78] : memref<8x128xf32, #tpu.memory_space<vmem>>, vector<1x128xf32>
      %73 = arith.index_cast %70 : i32 to index
      %c0_79 = arith.constant 0 : index
      %74 = vector.load %arg15[%73, %c0_79] : memref<16x128xf32, #tpu.memory_space<vmem>>, vector<1x128xf32>
      %c1_i32_80 = arith.constant 1 : i32
      %75 = arith.addi %64, %c1_i32_80 : i32
      %76 = arith.index_cast %75 : i32 to index
      %77 = memref.load %arg4[%76] : memref<16xi32, #tpu.memory_space<smem>>
      %c1_i32_81 = arith.constant 1 : i32
      %78 = arith.addi %64, %c1_i32_81 : i32
      %79 = arith.index_cast %78 : i32 to index
      %80 = memref.load %arg5[%79] : memref<16xi32, #tpu.memory_space<smem>>
      %81 = arith.index_cast %77 : i32 to index
      %c0_82 = arith.constant 0 : index
      %82 = vector.load %arg16[%81, %c0_82] : memref<8x128xf32, #tpu.memory_space<vmem>>, vector<1x128xf32>
      %83 = arith.index_cast %80 : i32 to index
      %c0_83 = arith.constant 0 : index
      %84 = vector.load %arg15[%83, %c0_83] : memref<16x128xf32, #tpu.memory_space<vmem>>, vector<1x128xf32>
      %c2_i32_84 = arith.constant 2 : i32
      %85 = arith.addi %64, %c2_i32_84 : i32
      %86 = arith.index_cast %85 : i32 to index
      %87 = memref.load %arg4[%86] : memref<16xi32, #tpu.memory_space<smem>>
      %c2_i32_85 = arith.constant 2 : i32
      %88 = arith.addi %64, %c2_i32_85 : i32
      %89 = arith.index_cast %88 : i32 to index
      %90 = memref.load %arg5[%89] : memref<16xi32, #tpu.memory_space<smem>>
      %91 = arith.index_cast %87 : i32 to index
      %c0_86 = arith.constant 0 : index
      %92 = vector.load %arg16[%91, %c0_86] : memref<8x128xf32, #tpu.memory_space<vmem>>, vector<1x128xf32>
      %93 = arith.index_cast %90 : i32 to index
      %c0_87 = arith.constant 0 : index
      %94 = vector.load %arg15[%93, %c0_87] : memref<16x128xf32, #tpu.memory_space<vmem>>, vector<1x128xf32>
      %c3_i32 = arith.constant 3 : i32
      %95 = arith.addi %64, %c3_i32 : i32
      %96 = arith.index_cast %95 : i32 to index
      %97 = memref.load %arg4[%96] : memref<16xi32, #tpu.memory_space<smem>>
      %c3_i32_88 = arith.constant 3 : i32
      %98 = arith.addi %64, %c3_i32_88 : i32
      %99 = arith.index_cast %98 : i32 to index
      %100 = memref.load %arg5[%99] : memref<16xi32, #tpu.memory_space<smem>>
      %101 = arith.index_cast %97 : i32 to index
      %c0_89 = arith.constant 0 : index
      %102 = vector.load %arg16[%101, %c0_89] : memref<8x128xf32, #tpu.memory_space<vmem>>, vector<1x128xf32>
      %103 = arith.index_cast %100 : i32 to index
      %c0_90 = arith.constant 0 : index
      %104 = vector.load %arg15[%103, %c0_90] : memref<16x128xf32, #tpu.memory_space<vmem>>, vector<1x128xf32>
      %c4_i32 = arith.constant 4 : i32
      %105 = arith.addi %64, %c4_i32 : i32
      %106 = arith.index_cast %105 : i32 to index
      %107 = memref.load %arg4[%106] : memref<16xi32, #tpu.memory_space<smem>>
      %c4_i32_91 = arith.constant 4 : i32
      %108 = arith.addi %64, %c4_i32_91 : i32
      %109 = arith.index_cast %108 : i32 to index
      %110 = memref.load %arg5[%109] : memref<16xi32, #tpu.memory_space<smem>>
      %111 = arith.index_cast %107 : i32 to index
      %c0_92 = arith.constant 0 : index
      %112 = vector.load %arg16[%111, %c0_92] : memref<8x128xf32, #tpu.memory_space<vmem>>, vector<1x128xf32>
      %113 = arith.index_cast %110 : i32 to index
      %c0_93 = arith.constant 0 : index
      %114 = vector.load %arg15[%113, %c0_93] : memref<16x128xf32, #tpu.memory_space<vmem>>, vector<1x128xf32>
      %c5_i32 = arith.constant 5 : i32
      %115 = arith.addi %64, %c5_i32 : i32
      %116 = arith.index_cast %115 : i32 to index
      %117 = memref.load %arg4[%116] : memref<16xi32, #tpu.memory_space<smem>>
      %c5_i32_94 = arith.constant 5 : i32
      %118 = arith.addi %64, %c5_i32_94 : i32
      %119 = arith.index_cast %118 : i32 to index
      %120 = memref.load %arg5[%119] : memref<16xi32, #tpu.memory_space<smem>>
      %121 = arith.index_cast %117 : i32 to index
      %c0_95 = arith.constant 0 : index
      %122 = vector.load %arg16[%121, %c0_95] : memref<8x128xf32, #tpu.memory_space<vmem>>, vector<1x128xf32>
      %123 = arith.index_cast %120 : i32 to index
      %c0_96 = arith.constant 0 : index
      %124 = vector.load %arg15[%123, %c0_96] : memref<16x128xf32, #tpu.memory_space<vmem>>, vector<1x128xf32>
      %c6_i32 = arith.constant 6 : i32
      %125 = arith.addi %64, %c6_i32 : i32
      %126 = arith.index_cast %125 : i32 to index
      %127 = memref.load %arg4[%126] : memref<16xi32, #tpu.memory_space<smem>>
      %c6_i32_97 = arith.constant 6 : i32
      %128 = arith.addi %64, %c6_i32_97 : i32
      %129 = arith.index_cast %128 : i32 to index
      %130 = memref.load %arg5[%129] : memref<16xi32, #tpu.memory_space<smem>>
      %131 = arith.index_cast %127 : i32 to index
      %c0_98 = arith.constant 0 : index
      %132 = vector.load %arg16[%131, %c0_98] : memref<8x128xf32, #tpu.memory_space<vmem>>, vector<1x128xf32>
      %133 = arith.index_cast %130 : i32 to index
      %c0_99 = arith.constant 0 : index
      %134 = vector.load %arg15[%133, %c0_99] : memref<16x128xf32, #tpu.memory_space<vmem>>, vector<1x128xf32>
      %c7_i32 = arith.constant 7 : i32
      %135 = arith.addi %64, %c7_i32 : i32
      %136 = arith.index_cast %135 : i32 to index
      %137 = memref.load %arg4[%136] : memref<16xi32, #tpu.memory_space<smem>>
      %c7_i32_100 = arith.constant 7 : i32
      %138 = arith.addi %64, %c7_i32_100 : i32
      %139 = arith.index_cast %138 : i32 to index
      %140 = memref.load %arg5[%139] : memref<16xi32, #tpu.memory_space<smem>>
      %141 = arith.index_cast %137 : i32 to index
      %c0_101 = arith.constant 0 : index
      %142 = vector.load %arg16[%141, %c0_101] : memref<8x128xf32, #tpu.memory_space<vmem>>, vector<1x128xf32>
      %143 = arith.index_cast %140 : i32 to index
      %c0_102 = arith.constant 0 : index
      %144 = vector.load %arg15[%143, %c0_102] : memref<16x128xf32, #tpu.memory_space<vmem>>, vector<1x128xf32>
      %145 = tpu.concatenate %72, %82, %92, %102, %112, %122, %132, %142 in 0 : vector<1x128xf32>, vector<1x128xf32>, vector<1x128xf32>, vector<1x128xf32>, vector<1x128xf32>, vector<1x128xf32>, vector<1x128xf32>, vector<1x128xf32> -> vector<8x128xf32>
      %146 = tpu.concatenate %74, %84, %94, %104, %114, %124, %134, %144 in 0 : vector<1x128xf32>, vector<1x128xf32>, vector<1x128xf32>, vector<1x128xf32>, vector<1x128xf32>, vector<1x128xf32>, vector<1x128xf32>, vector<1x128xf32> -> vector<8x128xf32>
      %147 = arith.subf %145, %146 : vector<8x128xf32>
      %148 = arith.index_cast %64 : i32 to index
      %c0_103 = arith.constant 0 : index
      %149 = vector.load %arg17[%148, %c0_103] : memref<16x128xf32, #tpu.memory_space<vmem>>, vector<8x128xf32>
      tpu.vector_store %arg17[%148, %c0_103], %147 {strides = array<i32>} : memref<16x128xf32, #tpu.memory_space<vmem>>, vector<8x128xf32>,
    }
    %c2_i32_17 = arith.constant 2 : i32
    %c0_18 = arith.constant 0 : index
    %c0_19 = arith.constant 0 : index
    %14 = vector.load %arg14[%c0_18, %c0_19] : memref<16x128xf32, #tpu.memory_space<vmem>>, vector<16x128xf32>
    %c0_20 = arith.constant 0 : index
    %c0_21 = arith.constant 0 : index
    %15 = vector.load %arg17[%c0_20, %c0_21] : memref<16x128xf32, #tpu.memory_space<vmem>>, vector<16x128xf32>
    %16 = arith.truncf %15 : vector<16x128xf32> to vector<16x128xbf16>
    %c0_22 = arith.constant 0 : index
    %c0_23 = arith.constant 0 : index
    %17 = vector.load %arg7[%c0_22, %c0_23] : memref<128x128xbf16, #tpu.memory_space<vmem>>, vector<128x128xbf16>
    %cst_24 = arith.constant dense<0.000000e+00> : vector<16x128xf32>
    %18 = tpu.matmul %16, %17, %cst_24 {dimension_numbers = #tpu.dot_dimension_numbers<[1], [0], [0], [1], [0, 0, 1, 1], [], []>} : vector<16x128xbf16>, vector<128x128xbf16>, vector<16x128xf32> -> vector<16x128xf32>
    %19 = arith.addf %14, %18 : vector<16x128xf32>
    %cst_25 = arith.constant 0.000000e+00 : f32
    %20 = vector.broadcast %cst_25 : f32 to vector<16x128xf32>
    %21 = arith.maximumf %19, %20 : vector<16x128xf32>
    %c0_26 = arith.constant 0 : index
    %c0_27 = arith.constant 0 : index
    %22 = vector.load %arg15[%c0_26, %c0_27] : memref<16x128xf32, #tpu.memory_space<vmem>>, vector<16x128xf32>
    tpu.vector_store %arg15[%c0_26, %c0_27], %21 {strides = array<i32>} : memref<16x128xf32, #tpu.memory_space<vmem>>, vector<16x128xf32>,
    %c0_28 = arith.constant 0 : index
    %c0_29 = arith.constant 0 : index
    %23 = vector.load %arg2[%c0_28, %c0_29] : memref<8x16xbf16, #tpu.memory_space<vmem>>, vector<8x16xbf16>
    %c0_30 = arith.constant 0 : index
    %c0_31 = arith.constant 0 : index
    %24 = vector.load %arg15[%c0_30, %c0_31] : memref<16x128xf32, #tpu.memory_space<vmem>>, vector<16x128xf32>
    %25 = arith.truncf %24 : vector<16x128xf32> to vector<16x128xbf16>
    %cst_32 = arith.constant dense<0.000000e+00> : vector<8x128xf32>
    %26 = tpu.matmul %23, %25, %cst_32 {dimension_numbers = #tpu.dot_dimension_numbers<[1], [0], [0], [1], [0, 0, 1, 1], [], []>} : vector<8x16xbf16>, vector<16x128xbf16>, vector<8x128xf32> -> vector<8x128xf32>
    %c0_33 = arith.constant 0 : index
    %c0_34 = arith.constant 0 : index
    %27 = vector.load %arg16[%c0_33, %c0_34] : memref<8x128xf32, #tpu.memory_space<vmem>>, vector<8x128xf32>
    tpu.vector_store %arg16[%c0_33, %c0_34], %26 {strides = array<i32>} : memref<8x128xf32, #tpu.memory_space<vmem>>, vector<8x128xf32>,
    %c0_i32_35 = arith.constant 0 : i32
    %c2_i32_36 = arith.constant 2 : i32
    %28 = arith.addi %c0_i32_35, %c2_i32_36 : i32
    %c1_i32_37 = arith.constant 1 : i32
    scf.for %arg18 = %c0_i32_35 to %28 step %c1_i32_37  : i32 {
      %c8_i32 = arith.constant 8 : i32
      %63 = arith.muli %arg18, %c8_i32 : i32
      %64 = tpu.assume_multiple %63, 8 : i32
      %c0_i32_76 = arith.constant 0 : i32
      %65 = arith.addi %64, %c0_i32_76 : i32
      %66 = arith.index_cast %65 : i32 to index
      %67 = memref.load %arg4[%66] : memref<16xi32, #tpu.memory_space<smem>>
      %c0_i32_77 = arith.constant 0 : i32
      %68 = arith.addi %64, %c0_i32_77 : i32
      %69 = arith.index_cast %68 : i32 to index
      %70 = memref.load %arg5[%69] : memref<16xi32, #tpu.memory_space<smem>>
      %71 = arith.index_cast %67 : i32 to index
      %c0_78 = arith.constant 0 : index
      %72 = vector.load %arg16[%71, %c0_78] : memref<8x128xf32, #tpu.memory_space<vmem>>, vector<1x128xf32>
      %73 = arith.index_cast %70 : i32 to index
      %c0_79 = arith.constant 0 : index
      %74 = vector.load %arg15[%73, %c0_79] : memref<16x128xf32, #tpu.memory_space<vmem>>, vector<1x128xf32>
      %c1_i32_80 = arith.constant 1 : i32
      %75 = arith.addi %64, %c1_i32_80 : i32
      %76 = arith.index_cast %75 : i32 to index
      %77 = memref.load %arg4[%76] : memref<16xi32, #tpu.memory_space<smem>>
      %c1_i32_81 = arith.constant 1 : i32
      %78 = arith.addi %64, %c1_i32_81 : i32
      %79 = arith.index_cast %78 : i32 to index
      %80 = memref.load %arg5[%79] : memref<16xi32, #tpu.memory_space<smem>>
      %81 = arith.index_cast %77 : i32 to index
      %c0_82 = arith.constant 0 : index
      %82 = vector.load %arg16[%81, %c0_82] : memref<8x128xf32, #tpu.memory_space<vmem>>, vector<1x128xf32>
      %83 = arith.index_cast %80 : i32 to index
      %c0_83 = arith.constant 0 : index
      %84 = vector.load %arg15[%83, %c0_83] : memref<16x128xf32, #tpu.memory_space<vmem>>, vector<1x128xf32>
      %c2_i32_84 = arith.constant 2 : i32
      %85 = arith.addi %64, %c2_i32_84 : i32
      %86 = arith.index_cast %85 : i32 to index
      %87 = memref.load %arg4[%86] : memref<16xi32, #tpu.memory_space<smem>>
      %c2_i32_85 = arith.constant 2 : i32
      %88 = arith.addi %64, %c2_i32_85 : i32
      %89 = arith.index_cast %88 : i32 to index
      %90 = memref.load %arg5[%89] : memref<16xi32, #tpu.memory_space<smem>>
      %91 = arith.index_cast %87 : i32 to index
      %c0_86 = arith.constant 0 : index
      %92 = vector.load %arg16[%91, %c0_86] : memref<8x128xf32, #tpu.memory_space<vmem>>, vector<1x128xf32>
      %93 = arith.index_cast %90 : i32 to index
      %c0_87 = arith.constant 0 : index
      %94 = vector.load %arg15[%93, %c0_87] : memref<16x128xf32, #tpu.memory_space<vmem>>, vector<1x128xf32>
      %c3_i32 = arith.constant 3 : i32
      %95 = arith.addi %64, %c3_i32 : i32
      %96 = arith.index_cast %95 : i32 to index
      %97 = memref.load %arg4[%96] : memref<16xi32, #tpu.memory_space<smem>>
      %c3_i32_88 = arith.constant 3 : i32
      %98 = arith.addi %64, %c3_i32_88 : i32
      %99 = arith.index_cast %98 : i32 to index
      %100 = memref.load %arg5[%99] : memref<16xi32, #tpu.memory_space<smem>>
      %101 = arith.index_cast %97 : i32 to index
      %c0_89 = arith.constant 0 : index
      %102 = vector.load %arg16[%101, %c0_89] : memref<8x128xf32, #tpu.memory_space<vmem>>, vector<1x128xf32>
      %103 = arith.index_cast %100 : i32 to index
      %c0_90 = arith.constant 0 : index
      %104 = vector.load %arg15[%103, %c0_90] : memref<16x128xf32, #tpu.memory_space<vmem>>, vector<1x128xf32>
      %c4_i32 = arith.constant 4 : i32
      %105 = arith.addi %64, %c4_i32 : i32
      %106 = arith.index_cast %105 : i32 to index
      %107 = memref.load %arg4[%106] : memref<16xi32, #tpu.memory_space<smem>>
      %c4_i32_91 = arith.constant 4 : i32
      %108 = arith.addi %64, %c4_i32_91 : i32
      %109 = arith.index_cast %108 : i32 to index
      %110 = memref.load %arg5[%109] : memref<16xi32, #tpu.memory_space<smem>>
      %111 = arith.index_cast %107 : i32 to index
      %c0_92 = arith.constant 0 : index
      %112 = vector.load %arg16[%111, %c0_92] : memref<8x128xf32, #tpu.memory_space<vmem>>, vector<1x128xf32>
      %113 = arith.index_cast %110 : i32 to index
      %c0_93 = arith.constant 0 : index
      %114 = vector.load %arg15[%113, %c0_93] : memref<16x128xf32, #tpu.memory_space<vmem>>, vector<1x128xf32>
      %c5_i32 = arith.constant 5 : i32
      %115 = arith.addi %64, %c5_i32 : i32
      %116 = arith.index_cast %115 : i32 to index
      %117 = memref.load %arg4[%116] : memref<16xi32, #tpu.memory_space<smem>>
      %c5_i32_94 = arith.constant 5 : i32
      %118 = arith.addi %64, %c5_i32_94 : i32
      %119 = arith.index_cast %118 : i32 to index
      %120 = memref.load %arg5[%119] : memref<16xi32, #tpu.memory_space<smem>>
      %121 = arith.index_cast %117 : i32 to index
      %c0_95 = arith.constant 0 : index
      %122 = vector.load %arg16[%121, %c0_95] : memref<8x128xf32, #tpu.memory_space<vmem>>, vector<1x128xf32>
      %123 = arith.index_cast %120 : i32 to index
      %c0_96 = arith.constant 0 : index
      %124 = vector.load %arg15[%123, %c0_96] : memref<16x128xf32, #tpu.memory_space<vmem>>, vector<1x128xf32>
      %c6_i32 = arith.constant 6 : i32
      %125 = arith.addi %64, %c6_i32 : i32
      %126 = arith.index_cast %125 : i32 to index
      %127 = memref.load %arg4[%126] : memref<16xi32, #tpu.memory_space<smem>>
      %c6_i32_97 = arith.constant 6 : i32
      %128 = arith.addi %64, %c6_i32_97 : i32
      %129 = arith.index_cast %128 : i32 to index
      %130 = memref.load %arg5[%129] : memref<16xi32, #tpu.memory_space<smem>>
      %131 = arith.index_cast %127 : i32 to index
      %c0_98 = arith.constant 0 : index
      %132 = vector.load %arg16[%131, %c0_98] : memref<8x128xf32, #tpu.memory_space<vmem>>, vector<1x128xf32>
      %133 = arith.index_cast %130 : i32 to index
      %c0_99 = arith.constant 0 : index
      %134 = vector.load %arg15[%133, %c0_99] : memref<16x128xf32, #tpu.memory_space<vmem>>, vector<1x128xf32>
      %c7_i32 = arith.constant 7 : i32
      %135 = arith.addi %64, %c7_i32 : i32
      %136 = arith.index_cast %135 : i32 to index
      %137 = memref.load %arg4[%136] : memref<16xi32, #tpu.memory_space<smem>>
      %c7_i32_100 = arith.constant 7 : i32
      %138 = arith.addi %64, %c7_i32_100 : i32
      %139 = arith.index_cast %138 : i32 to index
      %140 = memref.load %arg5[%139] : memref<16xi32, #tpu.memory_space<smem>>
      %141 = arith.index_cast %137 : i32 to index
      %c0_101 = arith.constant 0 : index
      %142 = vector.load %arg16[%141, %c0_101] : memref<8x128xf32, #tpu.memory_space<vmem>>, vector<1x128xf32>
      %143 = arith.index_cast %140 : i32 to index
      %c0_102 = arith.constant 0 : index
      %144 = vector.load %arg15[%143, %c0_102] : memref<16x128xf32, #tpu.memory_space<vmem>>, vector<1x128xf32>
      %145 = tpu.concatenate %72, %82, %92, %102, %112, %122, %132, %142 in 0 : vector<1x128xf32>, vector<1x128xf32>, vector<1x128xf32>, vector<1x128xf32>, vector<1x128xf32>, vector<1x128xf32>, vector<1x128xf32>, vector<1x128xf32> -> vector<8x128xf32>
      %146 = tpu.concatenate %74, %84, %94, %104, %114, %124, %134, %144 in 0 : vector<1x128xf32>, vector<1x128xf32>, vector<1x128xf32>, vector<1x128xf32>, vector<1x128xf32>, vector<1x128xf32>, vector<1x128xf32>, vector<1x128xf32> -> vector<8x128xf32>
      %147 = arith.subf %145, %146 : vector<8x128xf32>
      %148 = arith.index_cast %64 : i32 to index
      %c0_103 = arith.constant 0 : index
      %149 = vector.load %arg17[%148, %c0_103] : memref<16x128xf32, #tpu.memory_space<vmem>>, vector<8x128xf32>
      tpu.vector_store %arg17[%148, %c0_103], %147 {strides = array<i32>} : memref<16x128xf32, #tpu.memory_space<vmem>>, vector<8x128xf32>,
    }
    %c2_i32_38 = arith.constant 2 : i32
    %c0_39 = arith.constant 0 : index
    %c0_40 = arith.constant 0 : index
    %29 = vector.load %arg14[%c0_39, %c0_40] : memref<16x128xf32, #tpu.memory_space<vmem>>, vector<16x128xf32>
    %c0_41 = arith.constant 0 : index
    %c0_42 = arith.constant 0 : index
    %30 = vector.load %arg17[%c0_41, %c0_42] : memref<16x128xf32, #tpu.memory_space<vmem>>, vector<16x128xf32>
    %31 = arith.truncf %30 : vector<16x128xf32> to vector<16x128xbf16>
    %c0_43 = arith.constant 0 : index
    %c0_44 = arith.constant 0 : index
    %32 = vector.load %arg7[%c0_43, %c0_44] : memref<128x128xbf16, #tpu.memory_space<vmem>>, vector<128x128xbf16>
    %cst_45 = arith.constant dense<0.000000e+00> : vector<16x128xf32>
    %33 = tpu.matmul %31, %32, %cst_45 {dimension_numbers = #tpu.dot_dimension_numbers<[1], [0], [0], [1], [0, 0, 1, 1], [], []>} : vector<16x128xbf16>, vector<128x128xbf16>, vector<16x128xf32> -> vector<16x128xf32>
    %34 = arith.addf %29, %33 : vector<16x128xf32>
    %cst_46 = arith.constant 0.000000e+00 : f32
    %35 = vector.broadcast %cst_46 : f32 to vector<16x128xf32>
    %36 = arith.maximumf %34, %35 : vector<16x128xf32>
    %c0_47 = arith.constant 0 : index
    %c0_48 = arith.constant 0 : index
    %37 = vector.load %arg15[%c0_47, %c0_48] : memref<16x128xf32, #tpu.memory_space<vmem>>, vector<16x128xf32>
    tpu.vector_store %arg15[%c0_47, %c0_48], %36 {strides = array<i32>} : memref<16x128xf32, #tpu.memory_space<vmem>>, vector<16x128xf32>,
    %c0_49 = arith.constant 0 : index
    %c0_50 = arith.constant 0 : index
    %38 = vector.load %arg2[%c0_49, %c0_50] : memref<8x16xbf16, #tpu.memory_space<vmem>>, vector<8x16xbf16>
    %c0_51 = arith.constant 0 : index
    %c0_52 = arith.constant 0 : index
    %39 = vector.load %arg15[%c0_51, %c0_52] : memref<16x128xf32, #tpu.memory_space<vmem>>, vector<16x128xf32>
    %40 = arith.truncf %39 : vector<16x128xf32> to vector<16x128xbf16>
    %cst_53 = arith.constant dense<0.000000e+00> : vector<8x128xf32>
    %41 = tpu.matmul %38, %40, %cst_53 {dimension_numbers = #tpu.dot_dimension_numbers<[1], [0], [0], [1], [0, 0, 1, 1], [], []>} : vector<8x16xbf16>, vector<16x128xbf16>, vector<8x128xf32> -> vector<8x128xf32>
    %c0_54 = arith.constant 0 : index
    %c0_55 = arith.constant 0 : index
    %42 = vector.load %arg0[%c0_54, %c0_55] : memref<8x128xf32, #tpu.memory_space<vmem>>, vector<8x128xf32>
    %c0_56 = arith.constant 0 : index
    %c0_57 = arith.constant 0 : index
    %43 = vector.load %arg8[%c0_56, %c0_57] : memref<128x128xf32, #tpu.memory_space<vmem>>, vector<128x128xf32>
    %cst_58 = arith.constant dense<0.000000e+00> : vector<8x128xf32>
    %44 = tpu.matmul %42, %43, %cst_58 {dimension_numbers = #tpu.dot_dimension_numbers<[1], [0], [0], [1], [0, 0, 1, 1], [], []>} : vector<8x128xf32>, vector<128x128xf32>, vector<8x128xf32> -> vector<8x128xf32>
    %c0_59 = arith.constant 0 : index
    %c0_60 = arith.constant 0 : index
    %45 = vector.load %arg9[%c0_59, %c0_60] : memref<128x128xf32, #tpu.memory_space<vmem>>, vector<128x128xf32>
    %cst_61 = arith.constant dense<0.000000e+00> : vector<8x128xf32>
    %46 = tpu.matmul %41, %45, %cst_61 {dimension_numbers = #tpu.dot_dimension_numbers<[1], [0], [0], [1], [0, 0, 1, 1], [], []>} : vector<8x128xf32>, vector<128x128xf32>, vector<8x128xf32> -> vector<8x128xf32>
    %47 = arith.addf %44, %46 : vector<8x128xf32>
    %c0_62 = arith.constant 0 : index
    %c0_63 = arith.constant 0 : index
    %48 = vector.load %arg10[%c0_62, %c0_63] : memref<1x128xf32, #tpu.memory_space<vmem>>, vector<1x128xf32>
    %49 = vector.broadcast %48 : vector<1x128xf32> to vector<8x128xf32>
    %50 = arith.addf %47, %49 : vector<8x128xf32>
    %cst_64 = arith.constant 0.000000e+00 : f32
    %51 = vector.broadcast %cst_64 : f32 to vector<8x128xf32>
    %52 = arith.maximumf %50, %51 : vector<8x128xf32>
    %c0_65 = arith.constant 0 : index
    %c0_66 = arith.constant 0 : index
    %53 = vector.load %arg3[%c0_65, %c0_66] : memref<8x8xf32, #tpu.memory_space<vmem>>, vector<8x8xf32>
    %cst_67 = arith.constant dense<0.000000e+00> : vector<8x128xf32>
    %54 = tpu.matmul %53, %52, %cst_67 {dimension_numbers = #tpu.dot_dimension_numbers<[1], [0], [0], [1], [0, 0, 1, 1], [], []>} : vector<8x8xf32>, vector<8x128xf32>, vector<8x128xf32> -> vector<8x128xf32>
    %c0_68 = arith.constant 0 : index
    %c0_69 = arith.constant 0 : index
    %55 = vector.load %arg11[%c0_68, %c0_69] : memref<128x128xf32, #tpu.memory_space<vmem>>, vector<128x128xf32>
    %cst_70 = arith.constant dense<0.000000e+00> : vector<8x128xf32>
    %56 = tpu.matmul %54, %55, %cst_70 {dimension_numbers = #tpu.dot_dimension_numbers<[1], [0], [0], [1], [0, 0, 1, 1], [], []>} : vector<8x128xf32>, vector<128x128xf32>, vector<8x128xf32> -> vector<8x128xf32>
    %c0_71 = arith.constant 0 : index
    %c0_72 = arith.constant 0 : index
    %57 = vector.load %arg12[%c0_71, %c0_72] : memref<1x128xf32, #tpu.memory_space<vmem>>, vector<1x128xf32>
    %58 = vector.broadcast %57 : vector<1x128xf32> to vector<8x128xf32>
    %59 = arith.addf %56, %58 : vector<8x128xf32>
    %cst_73 = arith.constant 0.000000e+00 : f32
    %60 = vector.broadcast %cst_73 : f32 to vector<8x128xf32>
    %61 = arith.maximumf %59, %60 : vector<8x128xf32>
    %c0_74 = arith.constant 0 : index
    %c0_75 = arith.constant 0 : index
    %62 = vector.load %arg13[%c0_74, %c0_75] : memref<8x128xf32, #tpu.memory_space<vmem>>, vector<8x128xf32>
    tpu.vector_store %arg13[%c0_74, %c0_75], %61 {strides = array<i32>} : memref<8x128xf32, #tpu.memory_space<vmem>>, vector<8x128xf32>,
    return
  }
}

</mosaic_0001>

<llo_original>
// kernel: tpu_custom_call.1
$region0: #{tpu_custom_call.1}
  #allocation0 [shape = 'u32[]', space=smem, size = 0x4, offset = 0x4, fixed_abs, tag = 'smem constant byte address 0x4 - core index']
  #allocation1 [shape = 'u32[144,128]{1,0:T(1,128)}', space=vmem, size = 0x12000, scoped, tag = 'internal scratch']
  #allocation2 [shape = 'f32[16,128]{1,0:T(8,128)}', space=vmem, size = 0x2000, scoped, tag = 'scratch operand']
  #allocation3 [shape = 'f32[16,128]{1,0:T(8,128)}', space=vmem, size = 0x2000, scoped, tag = 'scratch operand']
  #allocation4 [shape = 'f32[8,128]{1,0:T(8,128)}', space=vmem, size = 0x1000, scoped, tag = 'scratch operand']
  #allocation5 [shape = 'f32[16,128]{1,0:T(8,128)}', space=vmem, size = 0x2000, scoped, tag = 'scratch operand']
  %s0 = inlined_call_operand.hbm [shape: f32[8,128], index: 0, kind: input, shape index: {}]
  %s1 = inlined_call_operand.hbm [shape: bf16[16,128], index: 1, kind: input, shape index: {}]
  %s2 = inlined_call_operand.hbm [shape: bf16[8,16], index: 2, kind: input, shape index: {}]
  %s3 = inlined_call_operand.vmem [shape: f32[8,8], index: 3, kind: input, shape index: {}]
  %s4 = inlined_call_operand.vmem [shape: s32[16], index: 4, kind: input, shape index: {}]
  %s5 = inlined_call_operand.vmem [shape: s32[16], index: 5, kind: input, shape index: {}]
  %s6 = inlined_call_operand.hbm [shape: bf16[128,128], index: 6, kind: input, shape index: {}]
  %s7 = inlined_call_operand.hbm [shape: bf16[128,128], index: 7, kind: input, shape index: {}]
  %s8 = inlined_call_operand.hbm [shape: f32[128,128], index: 8, kind: input, shape index: {}]
  %s9 = inlined_call_operand.hbm [shape: f32[128,128], index: 9, kind: input, shape index: {}]
  %s10 = inlined_call_operand.vmem [shape: f32[1,128], index: 10, kind: input, shape index: {}]
  %s11 = inlined_call_operand.hbm [shape: f32[128,128], index: 11, kind: input, shape index: {}]
  %s12 = inlined_call_operand.vmem [shape: f32[1,128], index: 12, kind: input, shape index: {}]
  %s13 = inlined_call_operand.hbm [shape: f32[8,128], index: 13, kind: output, shape index: {}]
  %s14 = sld [smem:[#allocation0]]
  $region116: #{tpu_custom_call.1} parent=0
    _
  %s16 = ssub.s32 1, %s14
  %s17 = scalar_select 0, %s16, %s14
  $region1: #{tpu_custom_call.1} parent=0
    #allocation6 [shape = 'u8[4096]{0}', space=vmem, size = 0x1000, scoped, tag = 'input window, operand 0, single buffered']
    #allocation7 [shape = 's32[1]{0}', space=sflag, size = 0x4, scoped, tag = 'scoped memory for tpu_custom_call.1']
    #allocation8 [shape = 's32[1]{0}', space=sflag, size = 0x4, scoped, tag = 'scoped memory for tpu_custom_call.1']
    #allocation9 [shape = 's32[1]{0}', space=sflag, size = 0x4, scoped, tag = 'scoped memory for tpu_custom_call.1']
    #allocation10 [shape = 'u8[4096]{0}', space=vmem, size = 0x1000, scoped, tag = 'input window, operand 1, single buffered']
    #allocation11 [shape = 's32[1]{0}', space=sflag, size = 0x4, scoped, tag = 'scoped memory for tpu_custom_call.1']
    #allocation12 [shape = 'u8[2048]{0}', space=vmem, size = 0x800, scoped, tag = 'input window, operand 2, single buffered']
    #allocation13 [shape = 'u8[512]{0}', space=smem, size = 0x200, scoped, tag = 'input window, operand 4, single buffered']
    #allocation14 [shape = 'u8[512]{0}', space=smem, size = 0x200, scoped, tag = 'input window, operand 5, single buffered']
    #allocation15 [shape = 's32[1]{0}', space=sflag, size = 0x4, scoped, tag = 'scoped memory for tpu_custom_call.1']
    #allocation16 [shape = 'u8[32768]{0}', space=vmem, size = 0x8000, scoped, tag = 'input window, operand 6, single buffered']
    #allocation17 [shape = 's32[1]{0}', space=sflag, size = 0x4, scoped, tag = 'scoped memory for tpu_custom_call.1']
    #allocation18 [shape = 'u8[32768]{0}', space=vmem, size = 0x8000, scoped, tag = 'input window, operand 7, single buffered']
    #allocation19 [shape = 'u8[65536]{0}', space=vmem, size = 0x10000, scoped, tag = 'input window, operand 8, single buffered']
    #allocation20 [shape = 's32[1]{0}', space=sflag, size = 0x4, scoped, tag = 'scoped memory for tpu_custom_call.1']
    #allocation21 [shape = 'u8[65536]{0}', space=vmem, size = 0x10000, scoped, tag = 'input window, operand 9, single buffered']
    #allocation22 [shape = 'u8[65536]{0}', space=vmem, size = 0x10000, scoped, tag = 'input window, operand 11, single buffered']
    #allocation23 [shape = 's32[1]{0}', space=sflag, size = 0x4, scoped, tag = 'scoped memory for tpu_custom_call.1']
    #allocation24 [shape = 'u8[4096]{0}', space=vmem, size = 0x1000, scoped, tag = 'output window, operand 0, single buffered']
    %18 = vsyncpa [#allocation7], 0
    %19 = vsyncpa [#allocation11], 0
    %20 = vsyncpa [#allocation9], 0
    %21 = vsyncpa [#allocation15], 0
    %22 = vsyncpa [#allocation17], 0
    %23 = vsyncpa [#allocation20], 0
    %24 = vsyncpa [#allocation23], 0
    %25 = vsyncpa [#allocation8], 0
    // Predicated region
    $region2: #{tpu_custom_call.1} parent=1 // pred_check
      _
    $region3: #{tpu_custom_call.1} parent=1 // pred_check_branch
      %27 = sbr.rel (0) target = $region5
    $region4: #{tpu_custom_call.1} parent=1 // pred_region
      %s29 = ssub.s32 128, 128
      %30 = vsyncadd [#allocation7], %s29
      %s32 = sshll.u32 [#allocation6], 4
      %s33 = int_to_ptr.vmem [resolvable:$true] %s32
      %35 = dma.hbm_to_vmem [thread:$0]  %s0, 128, %s33, [#allocation7]
    $region5: #{tpu_custom_call.1} parent=1 // pred_fallthru
      _
    // Predicated region
    $region6: #{tpu_custom_call.1} parent=1 // pred_check
      _
    $region7: #{tpu_custom_call.1} parent=1 // pred_check_branch
      %37 = sbr.rel (0) target = $region9
    $region8: #{tpu_custom_call.1} parent=1 // pred_region
      %s39 = ssub.s32 128, 128
      %40 = vsyncadd [#allocation11], %s39
      %s41 = sshll.u32 [#allocation10], 4
      %s42 = int_to_ptr.vmem [resolvable:$true] %s41
      %47 = dma.hbm_to_vmem [thread:$0]  %s1, 128, %s42, [#allocation11], 64, 64, 4
    $region9: #{tpu_custom_call.1} parent=1 // pred_fallthru
      _
    // Predicated region
    $region10: #{tpu_custom_call.1} parent=1 // pred_check
      _
    $region11: #{tpu_custom_call.1} parent=1 // pred_check_branch
      %49 = sbr.rel (0) target = $region13
    $region12: #{tpu_custom_call.1} parent=1 // pred_region
      %s51 = ssub.s32 64, 64
      %52 = vsyncadd [#allocation11], %s51
      %s54 = sshll.u32 [#allocation12], 4
      %s55 = int_to_ptr.vmem [resolvable:$true] %s54
      %57 = dma.hbm_to_vmem [thread:$0]  %s2, 64, %s55, [#allocation11]
    $region13: #{tpu_custom_call.1} parent=1 // pred_fallthru
      _
    // Predicated region
    $region14: #{tpu_custom_call.1} parent=1 // pred_check
      _
    $region15: #{tpu_custom_call.1} parent=1 // pred_check_branch
      %59 = sbr.rel (0) target = $region17
    $region16: #{tpu_custom_call.1} parent=1 // pred_region
      _
    $region17: #{tpu_custom_call.1} parent=1 // pred_fallthru
      _
    // Predicated region
    $region18: #{tpu_custom_call.1} parent=1 // pred_check
      _
    $region19: #{tpu_custom_call.1} parent=1 // pred_check_branch
      %61 = sbr.rel (0) target = $region21
    $region20: #{tpu_custom_call.1} parent=1 // pred_region
      %s63 = ssub.s32 16, 16
      %64 = vsyncadd [#allocation9], %s63
      %s66 = sshll.u32 %s4, 4
      %s67 = int_to_ptr.vmem [resolvable:$true] %s66
      %69 = dma.vmem_to_smem %s67, 16, [#allocation13], [#allocation9]
    $region21: #{tpu_custom_call.1} parent=1 // pred_fallthru
      _
    // Predicated region
    $region22: #{tpu_custom_call.1} parent=1 // pred_check
      _
    $region23: #{tpu_custom_call.1} parent=1 // pred_check_branch
      %71 = sbr.rel (0) target = $region25
    $region24: #{tpu_custom_call.1} parent=1 // pred_region
      %s73 = ssub.s32 16, 16
      %74 = vsyncadd [#allocation15], %s73
      %s76 = sshll.u32 %s5, 4
      %s77 = int_to_ptr.vmem [resolvable:$true] %s76
      %79 = dma.vmem_to_smem %s77, 16, [#allocation14], [#allocation15]
    $region25: #{tpu_custom_call.1} parent=1 // pred_fallthru
      _
    // Predicated region
    $region26: #{tpu_custom_call.1} parent=1 // pred_check
      _
    $region27: #{tpu_custom_call.1} parent=1 // pred_check_branch
      %81 = sbr.rel (0) target = $region29
    $region28: #{tpu_custom_call.1} parent=1 // pred_region
      %s83 = ssub.s32 1024, 1024
      %84 = vsyncadd [#allocation17], %s83
      %s85 = sshll.u32 [#allocation16], 4
      %s86 = int_to_ptr.vmem [resolvable:$true] %s85
      %91 = dma.hbm_to_vmem [thread:$0]  %s6, 1024, %s86, [#allocation17], 64, 64, 4
    $region29: #{tpu_custom_call.1} parent=1 // pred_fallthru
      _
    // Predicated region
    $region30: #{tpu_custom_call.1} parent=1 // pred_check
      _
    $region31: #{tpu_custom_call.1} parent=1 // pred_check_branch
      %93 = sbr.rel (0) target = $region33
    $region32: #{tpu_custom_call.1} parent=1 // pred_region
      %s95 = ssub.s32 1024, 1024
      %96 = vsyncadd [#allocation17], %s95
      %s97 = sshll.u32 [#allocation18], 4
      %s98 = int_to_ptr.vmem [resolvable:$true] %s97
      %103 = dma.hbm_to_vmem [thread:$0]  %s7, 1024, %s98, [#allocation17], 64, 64, 4
    $region33: #{tpu_custom_call.1} parent=1 // pred_fallthru
      _
    // Predicated region
    $region34: #{tpu_custom_call.1} parent=1 // pred_check
      _
    $region35: #{tpu_custom_call.1} parent=1 // pred_check_branch
      %105 = sbr.rel (0) target = $region37
    $region36: #{tpu_custom_call.1} parent=1 // pred_region
      %s107 = ssub.s32 2048, 2048
      %108 = vsyncadd [#allocation20], %s107
      %s109 = sshll.u32 [#allocation19], 4
      %s110 = int_to_ptr.vmem [resolvable:$true] %s109
      %115 = dma.hbm_to_vmem [thread:$0]  %s8, 2048, %s110, [#allocation20], 128, 128, 8
    $region37: #{tpu_custom_call.1} parent=1 // pred_fallthru
      _
    // Predicated region
    $region38: #{tpu_custom_call.1} parent=1 // pred_check
      _
    $region39: #{tpu_custom_call.1} parent=1 // pred_check_branch
      %117 = sbr.rel (0) target = $region41
    $region40: #{tpu_custom_call.1} parent=1 // pred_region
      %s119 = ssub.s32 2048, 2048
      %120 = vsyncadd [#allocation20], %s119
      %s121 = sshll.u32 [#allocation21], 4
      %s122 = int_to_ptr.vmem [resolvable:$true] %s121
      %127 = dma.hbm_to_vmem [thread:$0]  %s9, 2048, %s122, [#allocation20], 128, 128, 8
    $region41: #{tpu_custom_call.1} parent=1 // pred_fallthru
      _
    // Predicated region
    $region42: #{tpu_custom_call.1} parent=1 // pred_check
      _
    $region43: #{tpu_custom_call.1} parent=1 // pred_check_branch
      %129 = sbr.rel (0) target = $region45
    $region44: #{tpu_custom_call.1} parent=1 // pred_region
      _
    $region45: #{tpu_custom_call.1} parent=1 // pred_fallthru
      _
    // Predicated region
    $region46: #{tpu_custom_call.1} parent=1 // pred_check
      _
    $region47: #{tpu_custom_call.1} parent=1 // pred_check_branch
      %131 = sbr.rel (0) target = $region49
    $region48: #{tpu_custom_call.1} parent=1 // pred_region
      %s133 = ssub.s32 2048, 2048
      %134 = vsyncadd [#allocation23], %s133
      %s135 = sshll.u32 [#allocation22], 4
      %s136 = int_to_ptr.vmem [resolvable:$true] %s135
      %141 = dma.hbm_to_vmem [thread:$0]  %s11, 2048, %s136, [#allocation23], 128, 128, 8
    $region49: #{tpu_custom_call.1} parent=1 // pred_fallthru
      _
    // Predicated region
    $region50: #{tpu_custom_call.1} parent=1 // pred_check
      _
    $region51: #{tpu_custom_call.1} parent=1 // pred_check_branch
      %143 = sbr.rel (0) target = $region53
    $region52: #{tpu_custom_call.1} parent=1 // pred_region
      _
    $region53: #{tpu_custom_call.1} parent=1 // pred_fallthru
      _
    // Predicated region
    $region54: #{tpu_custom_call.1} parent=1 // pred_check
      _
    $region55: #{tpu_custom_call.1} parent=1 // pred_check_branch
      %145 = sbr.rel (0) target = $region57
    $region56: #{tpu_custom_call.1} parent=1 // pred_region
      %146 = dma.done [#allocation7], 128
    $region57: #{tpu_custom_call.1} parent=1 // pred_fallthru
      _
    // Predicated region
    $region58: #{tpu_custom_call.1} parent=1 // pred_check
      _
    $region59: #{tpu_custom_call.1} parent=1 // pred_check_branch
      %148 = sbr.rel (0) target = $region61
    $region60: #{tpu_custom_call.1} parent=1 // pred_region
      %149 = dma.done [#allocation11], 128
    $region61: #{tpu_custom_call.1} parent=1 // pred_fallthru
      _
    // Predicated region
    $region62: #{tpu_custom_call.1} parent=1 // pred_check
      _
    $region63: #{tpu_custom_call.1} parent=1 // pred_check_branch
      %151 = sbr.rel (0) target = $region65
    $region64: #{tpu_custom_call.1} parent=1 // pred_region
      %152 = dma.done [#allocation11], 64
    $region65: #{tpu_custom_call.1} parent=1 // pred_fallthru
      _
    // Predicated region
    $region66: #{tpu_custom_call.1} parent=1 // pred_check
      _
    $region67: #{tpu_custom_call.1} parent=1 // pred_check_branch
      %154 = sbr.rel (0) target = $region69
    $region68: #{tpu_custom_call.1} parent=1 // pred_region
      %155 = dma.done [#allocation9], 16
    $region69: #{tpu_custom_call.1} parent=1 // pred_fallthru
      _
    // Predicated region
    $region70: #{tpu_custom_call.1} parent=1 // pred_check
      _
    $region71: #{tpu_custom_call.1} parent=1 // pred_check_branch
      %157 = sbr.rel (0) target = $region73
    $region72: #{tpu_custom_call.1} parent=1 // pred_region
      %158 = dma.done [#allocation15], 16
    $region73: #{tpu_custom_call.1} parent=1 // pred_fallthru
      _
    // Predicated region
    $region74: #{tpu_custom_call.1} parent=1 // pred_check
      _
    $region75: #{tpu_custom_call.1} parent=1 // pred_check_branch
      %160 = sbr.rel (0) target = $region77
    $region76: #{tpu_custom_call.1} parent=1 // pred_region
      %161 = dma.done [#allocation17], 1024
    $region77: #{tpu_custom_call.1} parent=1 // pred_fallthru
      _
    // Predicated region
    $region78: #{tpu_custom_call.1} parent=1 // pred_check
      _
    $region79: #{tpu_custom_call.1} parent=1 // pred_check_branch
      %163 = sbr.rel (0) target = $region81
    $region80: #{tpu_custom_call.1} parent=1 // pred_region
      %164 = dma.done [#allocation17], 1024
    $region81: #{tpu_custom_call.1} parent=1 // pred_fallthru
      _
    // Predicated region
    $region82: #{tpu_custom_call.1} parent=1 // pred_check
      _
    $region83: #{tpu_custom_call.1} parent=1 // pred_check_branch
      %166 = sbr.rel (0) target = $region85
    $region84: #{tpu_custom_call.1} parent=1 // pred_region
      %167 = dma.done [#allocation20], 2048
    $region85: #{tpu_custom_call.1} parent=1 // pred_fallthru
      _
    // Predicated region
    $region86: #{tpu_custom_call.1} parent=1 // pred_check
      _
    $region87: #{tpu_custom_call.1} parent=1 // pred_check_branch
      %169 = sbr.rel (0) target = $region89
    $region88: #{tpu_custom_call.1} parent=1 // pred_region
      %170 = dma.done [#allocation20], 2048
    $region89: #{tpu_custom_call.1} parent=1 // pred_fallthru
      _
    // Predicated region
    $region90: #{tpu_custom_call.1} parent=1 // pred_check
      _
    $region91: #{tpu_custom_call.1} parent=1 // pred_check_branch
      %172 = sbr.rel (0) target = $region93
    $region92: #{tpu_custom_call.1} parent=1 // pred_region
      %173 = dma.done [#allocation23], 2048
    $region93: #{tpu_custom_call.1} parent=1 // pred_fallthru
      _
    %174 = sfence
    %v176 = vld [vmem:[#allocation10] sm:$0xf]
    %v177 = vld [vmem:[#allocation10 + $0x4] sm:$0xf]
    %v178 = vld [vmem:[#allocation16] sm:$0xf]
    %v179 = vld [vmem:[#allocation16 + $0x4] sm:$0xf]
    %v180 = vld [vmem:[#allocation16 + $0x8] sm:$0xf]
    %v181 = vld [vmem:[#allocation16 + $0xc] sm:$0xf]
    %v182 = vld [vmem:[#allocation16 + $0x10] sm:$0xf]
    %v183 = vld [vmem:[#allocation16 + $0x14] sm:$0xf]
    %v184 = vld [vmem:[#allocation16 + $0x18] sm:$0xf]
    %v185 = vld [vmem:[#allocation16 + $0x1c] sm:$0xf]
    %v186 = vld [vmem:[#allocation16 + $0x20] sm:$0xf]
    %v187 = vld [vmem:[#allocation16 + $0x24] sm:$0xf]
    %v188 = vld [vmem:[#allocation16 + $0x28] sm:$0xf]
    %v189 = vld [vmem:[#allocation16 + $0x2c] sm:$0xf]
    %v190 = vld [vmem:[#allocation16 + $0x30] sm:$0xf]
    %v191 = vld [vmem:[#allocation16 + $0x34] sm:$0xf]
    %v192 = vld [vmem:[#allocation16 + $0x38] sm:$0xf]
    %v193 = vld [vmem:[#allocation16 + $0x3c] sm:$0xf]
    %v196 = vunpack.c.l.b16 %v176
    %v197 = vunpack.c.l.b16 %v177
    %v198 = vpack.c.b16 %v197, %v196
    %v216 = vunpack.c.l.b16 %v178
    %v217 = vunpack.c.l.b16 %v179
    %v218 = vunpack.c.l.b16 %v180
    %v219 = vunpack.c.l.b16 %v181
    %v220 = vunpack.c.l.b16 %v182
    %v221 = vunpack.c.l.b16 %v183
    %v222 = vunpack.c.l.b16 %v184
    %v223 = vunpack.c.l.b16 %v185
    %v224 = vunpack.c.l.b16 %v186
    %v225 = vunpack.c.l.b16 %v187
    %v226 = vunpack.c.l.b16 %v188
    %v227 = vunpack.c.l.b16 %v189
    %v228 = vunpack.c.l.b16 %v190
    %v229 = vunpack.c.l.b16 %v191
    %v230 = vunpack.c.l.b16 %v192
    %v231 = vunpack.c.l.b16 %v193
    %v232 = vpack.c.b16 %v217, %v216
    %v233 = vpack.c.b16 %v219, %v218
    %v234 = vpack.c.b16 %v221, %v220
    %v235 = vpack.c.b16 %v223, %v222
    %v236 = vpack.c.b16 %v225, %v224
    %v237 = vpack.c.b16 %v227, %v226
    %v238 = vpack.c.b16 %v229, %v228
    %v239 = vpack.c.b16 %v231, %v230
    %248 = vmatprep.subr.bf16.mxu0 0
    %249 = vmatpush1.bf16.msra.mxu0 %v232
    %250 = vmatprep.subr.bf16.mxu0 0
    %251 = vmatpush1.bf16.msra.mxu0 %v233
    %252 = vmatprep.subr.bf16.mxu0 0
    %253 = vmatpush1.bf16.msra.mxu0 %v234
    %254 = vmatprep.subr.bf16.mxu0 0
    %255 = vmatpush1.bf16.msra.mxu0 %v235
    %256 = vmatprep.subr.bf16.mxu0 0
    %257 = vmatpush1.bf16.msra.mxu0 %v236
    %258 = vmatprep.subr.bf16.mxu0 0
    %259 = vmatpush1.bf16.msra.mxu0 %v237
    %260 = vmatprep.subr.bf16.mxu0 0
    %261 = vmatpush1.bf16.msra.mxu0 %v238
    %262 = vmatprep.subr.bf16.mxu0 0
    %263 = vmatpush1.bf16.msra.mxu0 %v239
    %264 = vmatprep.subr.bf16.mxu0 0
    %265 = vmatpush1.bf16.msra.mxu0 0
    %266 = vmatprep.subr.bf16.mxu0 0
    %267 = vmatpush1.bf16.msra.mxu0 0
    %268 = vmatprep.subr.bf16.mxu0 0
    %269 = vmatpush1.bf16.msra.mxu0 0
    %270 = vmatprep.subr.bf16.mxu0 0
    %271 = vmatpush1.bf16.msra.mxu0 0
    %272 = vmatprep.subr.bf16.mxu0 0
    %273 = vmatpush1.bf16.msra.mxu0 0
    %274 = vmatprep.subr.bf16.mxu0 0
    %275 = vmatpush1.bf16.msra.mxu0 0
    %276 = vmatprep.subr.bf16.mxu0 0
    %277 = vmatpush1.bf16.msra.mxu0 0
    %278 = vmatprep.subr.bf16.mxu0 0
    %279 = vmatpush1.bf16.msra.mxu0 0
    %280 = vmatprep.mubr.bf16.mxu0 0
    %281 = vmatmul.mubr.bf16.gmra.mrb[0].mxu0 %v198
    %v282 = vpop.f32.mrb[0].mxu0
    %v283 = vadd.f32 0.0, %v282
    %v284 = vpop.f32.mrb[0].mxu0
    %v285 = vpop.f32.mrb[0].mxu0
    %v286 = vadd.f32 0.0, %v285
    %v287 = vpop.f32.mrb[0].mxu0
    %288 = vdwg.mxu0
    %289 = vst [vmem:[#allocation2] sm:$0xff] %v283
    %290 = vst [vmem:[#allocation2 + $0x8] sm:$0xff] %v286
    %v291 = vld [vmem:[#allocation2] sm:$0xff]
    %v292 = vld [vmem:[#allocation2 + $0x8] sm:$0xff]
    %v293 = vmax.f32 %v291, 0.0
    %v294 = vmax.f32 %v292, 0.0
    %295 = vst [vmem:[#allocation3] sm:$0xff] %v293
    %296 = vst [vmem:[#allocation3 + $0x8] sm:$0xff] %v294
    %v297 = vld [vmem:[#allocation12] sm:$0xf]
    %v298 = vld [vmem:[#allocation3] sm:$0xff]
    %v299 = vld [vmem:[#allocation3 + $0x8] sm:$0xff]
    %v300 = vpack.c.bf16 %v299, %v298
    %vm301 = vcmask 130048
    %v303 = vsel %vm301, %v297, 0
    %305 = vmatprep.subr.bf16.mxu0 0
    %306 = vmatpush1.bf16.msra.mxu0 %v300
    %307 = vmatprep.subr.bf16.mxu0 0
    %308 = vmatpush1.bf16.msra.mxu0 0
    %309 = vmatprep.subr.bf16.mxu0 0
    %310 = vmatpush1.bf16.msra.mxu0 0
    %311 = vmatprep.subr.bf16.mxu0 0
    %312 = vmatpush1.bf16.msra.mxu0 0
    %313 = vmatprep.subr.bf16.mxu0 0
    %314 = vmatpush1.bf16.msra.mxu0 0
    %315 = vmatprep.subr.bf16.mxu0 0
    %316 = vmatpush1.bf16.msra.mxu0 0
    %317 = vmatprep.subr.bf16.mxu0 0
    %318 = vmatpush1.bf16.msra.mxu0 0
    %319 = vmatprep.subr.bf16.mxu0 0
    %320 = vmatpush1.bf16.msra.mxu0 0
    %321 = vmatprep.subr.bf16.mxu0 0
    %322 = vmatpush1.bf16.msra.mxu0 0
    %323 = vmatprep.subr.bf16.mxu0 0
    %324 = vmatpush1.bf16.msra.mxu0 0
    %325 = vmatprep.subr.bf16.mxu0 0
    %326 = vmatpush1.bf16.msra.mxu0 0
    %327 = vmatprep.subr.bf16.mxu0 0
    %328 = vmatpush1.bf16.msra.mxu0 0
    %329 = vmatprep.subr.bf16.mxu0 0
    %330 = vmatpush1.bf16.msra.mxu0 0
    %331 = vmatprep.subr.bf16.mxu0 0
    %332 = vmatpush1.bf16.msra.mxu0 0
    %333 = vmatprep.subr.bf16.mxu0 0
    %334 = vmatpush1.bf16.msra.mxu0 0
    %335 = vmatprep.subr.bf16.mxu0 0
    %336 = vmatpush1.bf16.msra.mxu0 0
    %337 = vmatprep.mubr.bf16.mxu0 0
    %338 = vmatmul.mubr.bf16.gmra.mrb[0].mxu0 %v303
    %v339 = vpop.f32.mrb[0].mxu0
    %v340 = vadd.f32 0.0, %v339
    %v341 = vpop.f32.mrb[0].mxu0
    %v342 = vpop.f32.mrb[0].mxu0
    %v343 = vpop.f32.mrb[0].mxu0
    %344 = vdwg.mxu0
    %345 = vst [vmem:[#allocation4] sm:$0xff] %v340
    loop: start=0, step=1, limit=2
    $region94: #{tpu_custom_call.1} parent=1 // loop_pre_header
      _
    $region95: #{tpu_custom_call.1} parent=1 // loop_header
      %s347 = sphi 0, %s351
      %p348 = scmp.ge.s32.totalorder %s347, 2
    $region96: #{tpu_custom_call.1} parent=1 // loop_header_branch
      %350 = sbr.rel (%p348) target = $region100
    $region97: #{tpu_custom_call.1} parent=1 // loop_body
      %s352 = smul.u32 %s347, 8
      %s353 = sld [smem:[#allocation13 + %s352]]
      %s354 = sld [smem:[#allocation14 + %s352]]
      %s355 = scalar_lea.vmem [#allocation4], %s353
      %v356 = vld [vmem:[%s355] sm:$0x1]
      %s357 = scalar_lea.vmem [#allocation3], %s354
      %v358 = vld [vmem:[%s357] sm:$0x1]
      %s359 = sadd.s32 %s352, 1
      %s360 = sld [smem:[#allocation13 + %s359]]
      %s361 = sld [smem:[#allocation14 + %s359]]
      %s362 = scalar_lea.vmem [#allocation4], %s360
      %v363 = vld [vmem:[%s362] sm:$0x1]
      %s364 = scalar_lea.vmem [#allocation3], %s361
      %v365 = vld [vmem:[%s364] sm:$0x1]
      %s366 = sadd.s32 %s352, 2
      %s367 = sld [smem:[#allocation13 + %s366]]
      %s368 = sld [smem:[#allocation14 + %s366]]
      %s369 = scalar_lea.vmem [#allocation4], %s367
      %v370 = vld [vmem:[%s369] sm:$0x1]
      %s371 = scalar_lea.vmem [#allocation3], %s368
      %v372 = vld [vmem:[%s371] sm:$0x1]
      %s373 = sadd.s32 %s352, 3
      %s374 = sld [smem:[#allocation13 + %s373]]
      %s375 = sld [smem:[#allocation14 + %s373]]
      %s376 = scalar_lea.vmem [#allocation4], %s374
      %v377 = vld [vmem:[%s376] sm:$0x1]
      %s378 = scalar_lea.vmem [#allocation3], %s375
      %v379 = vld [vmem:[%s378] sm:$0x1]
      %s380 = sadd.s32 %s352, 4
      %s381 = sld [smem:[#allocation13 + %s380]]
      %s382 = sld [smem:[#allocation14 + %s380]]
      %s383 = scalar_lea.vmem [#allocation4], %s381
      %v384 = vld [vmem:[%s383] sm:$0x1]
      %s385 = scalar_lea.vmem [#allocation3], %s382
      %v386 = vld [vmem:[%s385] sm:$0x1]
      %s387 = sadd.s32 %s352, 5
      %s388 = sld [smem:[#allocation13 + %s387]]
      %s389 = sld [smem:[#allocation14 + %s387]]
      %s390 = scalar_lea.vmem [#allocation4], %s388
      %v391 = vld [vmem:[%s390] sm:$0x1]
      %s392 = scalar_lea.vmem [#allocation3], %s389
      %v393 = vld [vmem:[%s392] sm:$0x1]
      %s394 = sadd.s32 %s352, 6
      %s395 = sld [smem:[#allocation13 + %s394]]
      %s396 = sld [smem:[#allocation14 + %s394]]
      %s397 = scalar_lea.vmem [#allocation4], %s395
      %v398 = vld [vmem:[%s397] sm:$0x1]
      %s399 = scalar_lea.vmem [#allocation3], %s396
      %v400 = vld [vmem:[%s399] sm:$0x1]
      %s401 = sadd.s32 %s352, 7
      %s402 = sld [smem:[#allocation13 + %s401]]
      %s403 = sld [smem:[#allocation14 + %s401]]
      %s404 = scalar_lea.vmem [#allocation4], %s402
      %v405 = vld [vmem:[%s404] sm:$0x1]
      %s406 = scalar_lea.vmem [#allocation3], %s403
      %v407 = vld [vmem:[%s406] sm:$0x1]
      %v409 = vrot.slane %v363, 7
      %v412 = vrot.slane %v370, 6
      %v415 = vrot.slane %v377, 5
      %v418 = vrot.slane %v384, 4
      %v421 = vrot.slane %v391, 3
      %v424 = vrot.slane %v398, 2
      %v427 = vrot.slane %v405, 1
      %vm429 = vcmask 1040384
      %v430 = vsel %vm429, %v356, %v409
      %vm431 = vcmask 1041408
      %v432 = vsel %vm431, %v430, %v412
      %vm433 = vcmask 1042432
      %v434 = vsel %vm433, %v432, %v415
      %vm435 = vcmask 1043456
      %v436 = vsel %vm435, %v434, %v418
      %vm437 = vcmask 1044480
      %v438 = vsel %vm437, %v436, %v421
      %vm439 = vcmask 1045504
      %v440 = vsel %vm439, %v438, %v424
      %vm441 = vcmask 1046528
      %v442 = vsel %vm441, %v440, %v427
      %v444 = vrot.slane %v365, 7
      %v447 = vrot.slane %v372, 6
      %v450 = vrot.slane %v379, 5
      %v453 = vrot.slane %v386, 4
      %v456 = vrot.slane %v393, 3
      %v459 = vrot.slane %v400, 2
      %v462 = vrot.slane %v407, 1
      %v464 = vsel %vm429, %v358, %v444
      %v465 = vsel %vm431, %v464, %v447
      %v466 = vsel %vm433, %v465, %v450
      %v467 = vsel %vm435, %v466, %v453
      %v468 = vsel %vm437, %v467, %v456
      %v469 = vsel %vm439, %v468, %v459
      %v470 = vsel %vm441, %v469, %v462
      %v471 = vsub.f32 %v442, %v470
      %s472 = scalar_lea.vmem [#allocation5], %s352
      %473 = vst [vmem:[%s472] sm:$0xff] %v471
    $region98: #{tpu_custom_call.1} parent=1 // loop_footer
      %s351 = sadd.s32 1, %s347
    $region99: #{tpu_custom_call.1} parent=1 // loop_footer_branch
      %346 = sbr.rel target = $region95
    $region100: #{tpu_custom_call.1} parent=1 // loop_exit
      _
    %v474 = vld [vmem:[#allocation2] sm:$0xff]
    %v475 = vld [vmem:[#allocation2 + $0x8] sm:$0xff]
    %v476 = vld [vmem:[#allocation5] sm:$0xff]
    %v477 = vld [vmem:[#allocation5 + $0x8] sm:$0xff]
    %v478 = vpack.c.bf16 %v477, %v476
    %v479 = vld [vmem:[#allocation18] sm:$0xf]
    %v480 = vld [vmem:[#allocation18 + $0x4] sm:$0xf]
    %v481 = vld [vmem:[#allocation18 + $0x8] sm:$0xf]
    %v482 = vld [vmem:[#allocation18 + $0xc] sm:$0xf]
    %v483 = vld [vmem:[#allocation18 + $0x10] sm:$0xf]
    %v484 = vld [vmem:[#allocation18 + $0x14] sm:$0xf]
    %v485 = vld [vmem:[#allocation18 + $0x18] sm:$0xf]
    %v486 = vld [vmem:[#allocation18 + $0x1c] sm:$0xf]
    %v487 = vld [vmem:[#allocation18 + $0x20] sm:$0xf]
    %v488 = vld [vmem:[#allocation18 + $0x24] sm:$0xf]
    %v489 = vld [vmem:[#allocation18 + $0x28] sm:$0xf]
    %v490 = vld [vmem:[#allocation18 + $0x2c] sm:$0xf]
    %v491 = vld [vmem:[#allocation18 + $0x30] sm:$0xf]
    %v492 = vld [vmem:[#allocation18 + $0x34] sm:$0xf]
    %v493 = vld [vmem:[#allocation18 + $0x38] sm:$0xf]
    %v494 = vld [vmem:[#allocation18 + $0x3c] sm:$0xf]
    %v511 = vunpack.c.l.b16 %v479
    %v512 = vunpack.c.l.b16 %v480
    %v513 = vunpack.c.l.b16 %v481
    %v514 = vunpack.c.l.b16 %v482
    %v515 = vunpack.c.l.b16 %v483
    %v516 = vunpack.c.l.b16 %v484
    %v517 = vunpack.c.l.b16 %v485
    %v518 = vunpack.c.l.b16 %v486
    %v519 = vunpack.c.l.b16 %v487
    %v520 = vunpack.c.l.b16 %v488
    %v521 = vunpack.c.l.b16 %v489
    %v522 = vunpack.c.l.b16 %v490
    %v523 = vunpack.c.l.b16 %v491
    %v524 = vunpack.c.l.b16 %v492
    %v525 = vunpack.c.l.b16 %v493
    %v526 = vunpack.c.l.b16 %v494
    %v527 = vpack.c.b16 %v512, %v511
    %v528 = vpack.c.b16 %v514, %v513
    %v529 = vpack.c.b16 %v516, %v515
    %v530 = vpack.c.b16 %v518, %v517
    %v531 = vpack.c.b16 %v520, %v519
    %v532 = vpack.c.b16 %v522, %v521
    %v533 = vpack.c.b16 %v524, %v523
    %v534 = vpack.c.b16 %v526, %v525
    %543 = vmatprep.subr.bf16.mxu0 0
    %544 = vmatpush1.bf16.msra.mxu0 %v527
    %545 = vmatprep.subr.bf16.mxu0 0
    %546 = vmatpush1.bf16.msra.mxu0 %v528
    %547 = vmatprep.subr.bf16.mxu0 0
    %548 = vmatpush1.bf16.msra.mxu0 %v529
    %549 = vmatprep.subr.bf16.mxu0 0
    %550 = vmatpush1.bf16.msra.mxu0 %v530
    %551 = vmatprep.subr.bf16.mxu0 0
    %552 = vmatpush1.bf16.msra.mxu0 %v531
    %553 = vmatprep.subr.bf16.mxu0 0
    %554 = vmatpush1.bf16.msra.mxu0 %v532
    %555 = vmatprep.subr.bf16.mxu0 0
    %556 = vmatpush1.bf16.msra.mxu0 %v533
    %557 = vmatprep.subr.bf16.mxu0 0
    %558 = vmatpush1.bf16.msra.mxu0 %v534
    %559 = vmatprep.subr.bf16.mxu0 0
    %560 = vmatpush1.bf16.msra.mxu0 0
    %561 = vmatprep.subr.bf16.mxu0 0
    %562 = vmatpush1.bf16.msra.mxu0 0
    %563 = vmatprep.subr.bf16.mxu0 0
    %564 = vmatpush1.bf16.msra.mxu0 0
    %565 = vmatprep.subr.bf16.mxu0 0
    %566 = vmatpush1.bf16.msra.mxu0 0
    %567 = vmatprep.subr.bf16.mxu0 0
    %568 = vmatpush1.bf16.msra.mxu0 0
    %569 = vmatprep.subr.bf16.mxu0 0
    %570 = vmatpush1.bf16.msra.mxu0 0
    %571 = vmatprep.subr.bf16.mxu0 0
    %572 = vmatpush1.bf16.msra.mxu0 0
    %573 = vmatprep.subr.bf16.mxu0 0
    %574 = vmatpush1.bf16.msra.mxu0 0
    %575 = vmatprep.mubr.bf16.mxu0 0
    %576 = vmatmul.mubr.bf16.gmra.mrb[0].mxu0 %v478
    %v577 = vpop.f32.mrb[0].mxu0
    %v578 = vadd.f32 0.0, %v577
    %v579 = vpop.f32.mrb[0].mxu0
    %v580 = vpop.f32.mrb[0].mxu0
    %v581 = vadd.f32 0.0, %v580
    %v582 = vpop.f32.mrb[0].mxu0
    %583 = vdwg.mxu0
    %v584 = vadd.f32 %v474, %v578
    %v585 = vadd.f32 %v475, %v581
    %v586 = vmax.f32 %v584, 0.0
    %v587 = vmax.f32 %v585, 0.0
    %588 = vst [vmem:[#allocation3] sm:$0xff] %v586
    %589 = vst [vmem:[#allocation3 + $0x8] sm:$0xff] %v587
    %v590 = vld [vmem:[#allocation12] sm:$0xf]
    %v591 = vld [vmem:[#allocation3] sm:$0xff]
    %v592 = vld [vmem:[#allocation3 + $0x8] sm:$0xff]
    %v593 = vpack.c.bf16 %v592, %v591
    %v595 = vsel %vm301, %v590, 0
    %597 = vmatprep.subr.bf16.mxu0 0
    %598 = vmatpush1.bf16.msra.mxu0 %v593
    %599 = vmatprep.subr.bf16.mxu0 0
    %600 = vmatpush1.bf16.msra.mxu0 0
    %601 = vmatprep.subr.bf16.mxu0 0
    %602 = vmatpush1.bf16.msra.mxu0 0
    %603 = vmatprep.subr.bf16.mxu0 0
    %604 = vmatpush1.bf16.msra.mxu0 0
    %605 = vmatprep.subr.bf16.mxu0 0
    %606 = vmatpush1.bf16.msra.mxu0 0
    %607 = vmatprep.subr.bf16.mxu0 0
    %608 = vmatpush1.bf16.msra.mxu0 0
    %609 = vmatprep.subr.bf16.mxu0 0
    %610 = vmatpush1.bf16.msra.mxu0 0
    %611 = vmatprep.subr.bf16.mxu0 0
    %612 = vmatpush1.bf16.msra.mxu0 0
    %613 = vmatprep.subr.bf16.mxu0 0
    %614 = vmatpush1.bf16.msra.mxu0 0
    %615 = vmatprep.subr.bf16.mxu0 0
    %616 = vmatpush1.bf16.msra.mxu0 0
    %617 = vmatprep.subr.bf16.mxu0 0
    %618 = vmatpush1.bf16.msra.mxu0 0
    %619 = vmatprep.subr.bf16.mxu0 0
    %620 = vmatpush1.bf16.msra.mxu0 0
    %621 = vmatprep.subr.bf16.mxu0 0
    %622 = vmatpush1.bf16.msra.mxu0 0
    %623 = vmatprep.subr.bf16.mxu0 0
    %624 = vmatpush1.bf16.msra.mxu0 0
    %625 = vmatprep.subr.bf16.mxu0 0
    %626 = vmatpush1.bf16.msra.mxu0 0
    %627 = vmatprep.subr.bf16.mxu0 0
    %628 = vmatpush1.bf16.msra.mxu0 0
    %629 = vmatprep.mubr.bf16.mxu0 0
    %630 = vmatmul.mubr.bf16.gmra.mrb[0].mxu0 %v595
    %v631 = vpop.f32.mrb[0].mxu0
    %v632 = vadd.f32 0.0, %v631
    %v633 = vpop.f32.mrb[0].mxu0
    %v634 = vpop.f32.mrb[0].mxu0
    %v635 = vpop.f32.mrb[0].mxu0
    %636 = vdwg.mxu0
    %637 = vst [vmem:[#allocation4] sm:$0xff] %v632
    loop: start=0, step=1, limit=2
    $region101: #{tpu_custom_call.1} parent=1 // loop_pre_header
      _
    $region102: #{tpu_custom_call.1} parent=1 // loop_header
      %s639 = sphi 0, %s643
      %p640 = scmp.ge.s32.totalorder %s639, 2
    $region103: #{tpu_custom_call.1} parent=1 // loop_header_branch
      %642 = sbr.rel (%p640) target = $region107
    $region104: #{tpu_custom_call.1} parent=1 // loop_body
      %s644 = smul.u32 %s639, 8
      %s645 = sld [smem:[#allocation13 + %s644]]
      %s646 = sld [smem:[#allocation14 + %s644]]
      %s647 = scalar_lea.vmem [#allocation4], %s645
      %v648 = vld [vmem:[%s647] sm:$0x1]
      %s649 = scalar_lea.vmem [#allocation3], %s646
      %v650 = vld [vmem:[%s649] sm:$0x1]
      %s651 = sadd.s32 %s644, 1
      %s652 = sld [smem:[#allocation13 + %s651]]
      %s653 = sld [smem:[#allocation14 + %s651]]
      %s654 = scalar_lea.vmem [#allocation4], %s652
      %v655 = vld [vmem:[%s654] sm:$0x1]
      %s656 = scalar_lea.vmem [#allocation3], %s653
      %v657 = vld [vmem:[%s656] sm:$0x1]
      %s658 = sadd.s32 %s644, 2
      %s659 = sld [smem:[#allocation13 + %s658]]
      %s660 = sld [smem:[#allocation14 + %s658]]
      %s661 = scalar_lea.vmem [#allocation4], %s659
      %v662 = vld [vmem:[%s661] sm:$0x1]
      %s663 = scalar_lea.vmem [#allocation3], %s660
      %v664 = vld [vmem:[%s663] sm:$0x1]
      %s665 = sadd.s32 %s644, 3
      %s666 = sld [smem:[#allocation13 + %s665]]
      %s667 = sld [smem:[#allocation14 + %s665]]
      %s668 = scalar_lea.vmem [#allocation4], %s666
      %v669 = vld [vmem:[%s668] sm:$0x1]
      %s670 = scalar_lea.vmem [#allocation3], %s667
      %v671 = vld [vmem:[%s670] sm:$0x1]
      %s672 = sadd.s32 %s644, 4
      %s673 = sld [smem:[#allocation13 + %s672]]
      %s674 = sld [smem:[#allocation14 + %s672]]
      %s675 = scalar_lea.vmem [#allocation4], %s673
      %v676 = vld [vmem:[%s675] sm:$0x1]
      %s677 = scalar_lea.vmem [#allocation3], %s674
      %v678 = vld [vmem:[%s677] sm:$0x1]
      %s679 = sadd.s32 %s644, 5
      %s680 = sld [smem:[#allocation13 + %s679]]
      %s681 = sld [smem:[#allocation14 + %s679]]
      %s682 = scalar_lea.vmem [#allocation4], %s680
      %v683 = vld [vmem:[%s682] sm:$0x1]
      %s684 = scalar_lea.vmem [#allocation3], %s681
      %v685 = vld [vmem:[%s684] sm:$0x1]
      %s686 = sadd.s32 %s644, 6
      %s687 = sld [smem:[#allocation13 + %s686]]
      %s688 = sld [smem:[#allocation14 + %s686]]
      %s689 = scalar_lea.vmem [#allocation4], %s687
      %v690 = vld [vmem:[%s689] sm:$0x1]
      %s691 = scalar_lea.vmem [#allocation3], %s688
      %v692 = vld [vmem:[%s691] sm:$0x1]
      %s693 = sadd.s32 %s644, 7
      %s694 = sld [smem:[#allocation13 + %s693]]
      %s695 = sld [smem:[#allocation14 + %s693]]
      %s696 = scalar_lea.vmem [#allocation4], %s694
      %v697 = vld [vmem:[%s696] sm:$0x1]
      %s698 = scalar_lea.vmem [#allocation3], %s695
      %v699 = vld [vmem:[%s698] sm:$0x1]
      %v701 = vrot.slane %v655, 7
      %v704 = vrot.slane %v662, 6
      %v707 = vrot.slane %v669, 5
      %v710 = vrot.slane %v676, 4
      %v713 = vrot.slane %v683, 3
      %v716 = vrot.slane %v690, 2
      %v719 = vrot.slane %v697, 1
      %vm721 = vcmask 1040384
      %v722 = vsel %vm721, %v648, %v701
      %vm723 = vcmask 1041408
      %v724 = vsel %vm723, %v722, %v704
      %vm725 = vcmask 1042432
      %v726 = vsel %vm725, %v724, %v707
      %vm727 = vcmask 1043456
      %v728 = vsel %vm727, %v726, %v710
      %vm729 = vcmask 1044480
      %v730 = vsel %vm729, %v728, %v713
      %vm731 = vcmask 1045504
      %v732 = vsel %vm731, %v730, %v716
      %vm733 = vcmask 1046528
      %v734 = vsel %vm733, %v732, %v719
      %v736 = vrot.slane %v657, 7
      %v739 = vrot.slane %v664, 6
      %v742 = vrot.slane %v671, 5
      %v745 = vrot.slane %v678, 4
      %v748 = vrot.slane %v685, 3
      %v751 = vrot.slane %v692, 2
      %v754 = vrot.slane %v699, 1
      %v756 = vsel %vm721, %v650, %v736
      %v757 = vsel %vm723, %v756, %v739
      %v758 = vsel %vm725, %v757, %v742
      %v759 = vsel %vm727, %v758, %v745
      %v760 = vsel %vm729, %v759, %v748
      %v761 = vsel %vm731, %v760, %v751
      %v762 = vsel %vm733, %v761, %v754
      %v763 = vsub.f32 %v734, %v762
      %s764 = scalar_lea.vmem [#allocation5], %s644
      %765 = vst [vmem:[%s764] sm:$0xff] %v763
    $region105: #{tpu_custom_call.1} parent=1 // loop_footer
      %s643 = sadd.s32 1, %s639
    $region106: #{tpu_custom_call.1} parent=1 // loop_footer_branch
      %638 = sbr.rel target = $region102
    $region107: #{tpu_custom_call.1} parent=1 // loop_exit
      _
    %v766 = vld [vmem:[#allocation2] sm:$0xff]
    %v767 = vld [vmem:[#allocation2 + $0x8] sm:$0xff]
    %v768 = vld [vmem:[#allocation5] sm:$0xff]
    %v769 = vld [vmem:[#allocation5 + $0x8] sm:$0xff]
    %v770 = vpack.c.bf16 %v769, %v768
    %v771 = vld [vmem:[#allocation18] sm:$0xf]
    %v772 = vld [vmem:[#allocation18 + $0x4] sm:$0xf]
    %v773 = vld [vmem:[#allocation18 + $0x8] sm:$0xf]
    %v774 = vld [vmem:[#allocation18 + $0xc] sm:$0xf]
    %v775 = vld [vmem:[#allocation18 + $0x10] sm:$0xf]
    %v776 = vld [vmem:[#allocation18 + $0x14] sm:$0xf]
    %v777 = vld [vmem:[#allocation18 + $0x18] sm:$0xf]
    %v778 = vld [vmem:[#allocation18 + $0x1c] sm:$0xf]
    %v779 = vld [vmem:[#allocation18 + $0x20] sm:$0xf]
    %v780 = vld [vmem:[#allocation18 + $0x24] sm:$0xf]
    %v781 = vld [vmem:[#allocation18 + $0x28] sm:$0xf]
    %v782 = vld [vmem:[#allocation18 + $0x2c] sm:$0xf]
    %v783 = vld [vmem:[#allocation18 + $0x30] sm:$0xf]
    %v784 = vld [vmem:[#allocation18 + $0x34] sm:$0xf]
    %v785 = vld [vmem:[#allocation18 + $0x38] sm:$0xf]
    %v786 = vld [vmem:[#allocation18 + $0x3c] sm:$0xf]
    %v803 = vunpack.c.l.b16 %v771
    %v804 = vunpack.c.l.b16 %v772
    %v805 = vunpack.c.l.b16 %v773
    %v806 = vunpack.c.l.b16 %v774
    %v807 = vunpack.c.l.b16 %v775
    %v808 = vunpack.c.l.b16 %v776
    %v809 = vunpack.c.l.b16 %v777
    %v810 = vunpack.c.l.b16 %v778
    %v811 = vunpack.c.l.b16 %v779
    %v812 = vunpack.c.l.b16 %v780
    %v813 = vunpack.c.l.b16 %v781
    %v814 = vunpack.c.l.b16 %v782
    %v815 = vunpack.c.l.b16 %v783
    %v816 = vunpack.c.l.b16 %v784
    %v817 = vunpack.c.l.b16 %v785
    %v818 = vunpack.c.l.b16 %v786
    %v819 = vpack.c.b16 %v804, %v803
    %v820 = vpack.c.b16 %v806, %v805
    %v821 = vpack.c.b16 %v808, %v807
    %v822 = vpack.c.b16 %v810, %v809
    %v823 = vpack.c.b16 %v812, %v811
    %v824 = vpack.c.b16 %v814, %v813
    %v825 = vpack.c.b16 %v816, %v815
    %v826 = vpack.c.b16 %v818, %v817
    %835 = vmatprep.subr.bf16.mxu0 0
    %836 = vmatpush1.bf16.msra.mxu0 %v819
    %837 = vmatprep.subr.bf16.mxu0 0
    %838 = vmatpush1.bf16.msra.mxu0 %v820
    %839 = vmatprep.subr.bf16.mxu0 0
    %840 = vmatpush1.bf16.msra.mxu0 %v821
    %841 = vmatprep.subr.bf16.mxu0 0
    %842 = vmatpush1.bf16.msra.mxu0 %v822
    %843 = vmatprep.subr.bf16.mxu0 0
    %844 = vmatpush1.bf16.msra.mxu0 %v823
    %845 = vmatprep.subr.bf16.mxu0 0
    %846 = vmatpush1.bf16.msra.mxu0 %v824
    %847 = vmatprep.subr.bf16.mxu0 0
    %848 = vmatpush1.bf16.msra.mxu0 %v825
    %849 = vmatprep.subr.bf16.mxu0 0
    %850 = vmatpush1.bf16.msra.mxu0 %v826
    %851 = vmatprep.subr.bf16.mxu0 0
    %852 = vmatpush1.bf16.msra.mxu0 0
    %853 = vmatprep.subr.bf16.mxu0 0
    %854 = vmatpush1.bf16.msra.mxu0 0
    %855 = vmatprep.subr.bf16.mxu0 0
    %856 = vmatpush1.bf16.msra.mxu0 0
    %857 = vmatprep.subr.bf16.mxu0 0
    %858 = vmatpush1.bf16.msra.mxu0 0
    %859 = vmatprep.subr.bf16.mxu0 0
    %860 = vmatpush1.bf16.msra.mxu0 0
    %861 = vmatprep.subr.bf16.mxu0 0
    %862 = vmatpush1.bf16.msra.mxu0 0
    %863 = vmatprep.subr.bf16.mxu0 0
    %864 = vmatpush1.bf16.msra.mxu0 0
    %865 = vmatprep.subr.bf16.mxu0 0
    %866 = vmatpush1.bf16.msra.mxu0 0
    %867 = vmatprep.mubr.bf16.mxu0 0
    %868 = vmatmul.mubr.bf16.gmra.mrb[0].mxu0 %v770
    %v869 = vpop.f32.mrb[0].mxu0
    %v870 = vadd.f32 0.0, %v869
    %v871 = vpop.f32.mrb[0].mxu0
    %v872 = vpop.f32.mrb[0].mxu0
    %v873 = vadd.f32 0.0, %v872
    %v874 = vpop.f32.mrb[0].mxu0
    %875 = vdwg.mxu0
    %v876 = vadd.f32 %v766, %v870
    %v877 = vadd.f32 %v767, %v873
    %v878 = vmax.f32 %v876, 0.0
    %v879 = vmax.f32 %v877, 0.0
    %880 = vst [vmem:[#allocation3] sm:$0xff] %v878
    %881 = vst [vmem:[#allocation3 + $0x8] sm:$0xff] %v879
    %v882 = vld [vmem:[#allocation12] sm:$0xf]
    %v883 = vld [vmem:[#allocation3] sm:$0xff]
    %v884 = vld [vmem:[#allocation3 + $0x8] sm:$0xff]
    %v885 = vpack.c.bf16 %v884, %v883
    %v887 = vsel %vm301, %v882, 0
    %889 = vmatprep.subr.bf16.mxu0 0
    %890 = vmatpush1.bf16.msra.mxu0 %v885
    %891 = vmatprep.subr.bf16.mxu0 0
    %892 = vmatpush1.bf16.msra.mxu0 0
    %893 = vmatprep.subr.bf16.mxu0 0
    %894 = vmatpush1.bf16.msra.mxu0 0
    %895 = vmatprep.subr.bf16.mxu0 0
    %896 = vmatpush1.bf16.msra.mxu0 0
    %897 = vmatprep.subr.bf16.mxu0 0
    %898 = vmatpush1.bf16.msra.mxu0 0
    %899 = vmatprep.subr.bf16.mxu0 0
    %900 = vmatpush1.bf16.msra.mxu0 0
    %901 = vmatprep.subr.bf16.mxu0 0
    %902 = vmatpush1.bf16.msra.mxu0 0
    %903 = vmatprep.subr.bf16.mxu0 0
    %904 = vmatpush1.bf16.msra.mxu0 0
    %905 = vmatprep.subr.bf16.mxu0 0
    %906 = vmatpush1.bf16.msra.mxu0 0
    %907 = vmatprep.subr.bf16.mxu0 0
    %908 = vmatpush1.bf16.msra.mxu0 0
    %909 = vmatprep.subr.bf16.mxu0 0
    %910 = vmatpush1.bf16.msra.mxu0 0
    %911 = vmatprep.subr.bf16.mxu0 0
    %912 = vmatpush1.bf16.msra.mxu0 0
    %913 = vmatprep.subr.bf16.mxu0 0
    %914 = vmatpush1.bf16.msra.mxu0 0
    %915 = vmatprep.subr.bf16.mxu0 0
    %916 = vmatpush1.bf16.msra.mxu0 0
    %917 = vmatprep.subr.bf16.mxu0 0
    %918 = vmatpush1.bf16.msra.mxu0 0
    %919 = vmatprep.subr.bf16.mxu0 0
    %920 = vmatpush1.bf16.msra.mxu0 0
    %921 = vmatprep.mubr.bf16.mxu0 0
    %922 = vmatmul.mubr.bf16.gmra.mrb[0].mxu0 %v887
    %v923 = vpop.f32.mrb[0].mxu0
    %v924 = vadd.f32 0.0, %v923
    %v925 = vpop.f32.mrb[0].mxu0
    %v926 = vpop.f32.mrb[0].mxu0
    %v927 = vpop.f32.mrb[0].mxu0
    %928 = vdwg.mxu0
    %v929 = vld [vmem:[#allocation6] sm:$0xff]
    %v930 = vld [vmem:[#allocation19] sm:$0xff]
    %v931 = vld [vmem:[#allocation19 + $0x8] sm:$0xff]
    %v932 = vld [vmem:[#allocation19 + $0x10] sm:$0xff]
    %v933 = vld [vmem:[#allocation19 + $0x18] sm:$0xff]
    %v934 = vld [vmem:[#allocation19 + $0x20] sm:$0xff]
    %v935 = vld [vmem:[#allocation19 + $0x28] sm:$0xff]
    %v936 = vld [vmem:[#allocation19 + $0x30] sm:$0xff]
    %v937 = vld [vmem:[#allocation19 + $0x38] sm:$0xff]
    %v938 = vld [vmem:[#allocation19 + $0x40] sm:$0xff]
    %v939 = vld [vmem:[#allocation19 + $0x48] sm:$0xff]
    %v940 = vld [vmem:[#allocation19 + $0x50] sm:$0xff]
    %v941 = vld [vmem:[#allocation19 + $0x58] sm:$0xff]
    %v942 = vld [vmem:[#allocation19 + $0x60] sm:$0xff]
    %v943 = vld [vmem:[#allocation19 + $0x68] sm:$0xff]
    %v944 = vld [vmem:[#allocation19 + $0x70] sm:$0xff]
    %v945 = vld [vmem:[#allocation19 + $0x78] sm:$0xff]
    %v946 = vld [vmem:[#allocation21] sm:$0xff]
    %v947 = vld [vmem:[#allocation21 + $0x8] sm:$0xff]
    %v948 = vld [vmem:[#allocation21 + $0x10] sm:$0xff]
    %v949 = vld [vmem:[#allocation21 + $0x18] sm:$0xff]
    %v950 = vld [vmem:[#allocation21 + $0x20] sm:$0xff]
    %v951 = vld [vmem:[#allocation21 + $0x28] sm:$0xff]
    %v952 = vld [vmem:[#allocation21 + $0x30] sm:$0xff]
    %v953 = vld [vmem:[#allocation21 + $0x38] sm:$0xff]
    %v954 = vld [vmem:[#allocation21 + $0x40] sm:$0xff]
    %v955 = vld [vmem:[#allocation21 + $0x48] sm:$0xff]
    %v956 = vld [vmem:[#allocation21 + $0x50] sm:$0xff]
    %v957 = vld [vmem:[#allocation21 + $0x58] sm:$0xff]
    %v958 = vld [vmem:[#allocation21 + $0x60] sm:$0xff]
    %v959 = vld [vmem:[#allocation21 + $0x68] sm:$0xff]
    %v960 = vld [vmem:[#allocation21 + $0x70] sm:$0xff]
    %v961 = vld [vmem:[#allocation21 + $0x78] sm:$0xff]
    %962 = vmatprep.subr.mxu0 0.0
    %963 = vmatpush1.msra.mxu0 %v946
    %964 = vmatprep.subr.mxu0 0.0
    %965 = vmatpush1.msra.mxu0 %v947
    %966 = vmatprep.subr.mxu0 0.0
    %967 = vmatpush1.msra.mxu0 %v948
    %968 = vmatprep.subr.mxu0 0.0
    %969 = vmatpush1.msra.mxu0 %v949
    %970 = vmatprep.subr.mxu0 0.0
    %971 = vmatpush1.msra.mxu0 %v950
    %972 = vmatprep.subr.mxu0 0.0
    %973 = vmatpush1.msra.mxu0 %v951
    %974 = vmatprep.subr.mxu0 0.0
    %975 = vmatpush1.msra.mxu0 %v952
    %976 = vmatprep.subr.mxu0 0.0
    %977 = vmatpush1.msra.mxu0 %v953
    %978 = vmatprep.subr.mxu0 0.0
    %979 = vmatpush1.msra.mxu0 %v954
    %980 = vmatprep.subr.mxu0 0.0
    %981 = vmatpush1.msra.mxu0 %v955
    %982 = vmatprep.subr.mxu0 0.0
    %983 = vmatpush1.msra.mxu0 %v956
    %984 = vmatprep.subr.mxu0 0.0
    %985 = vmatpush1.msra.mxu0 %v957
    %986 = vmatprep.subr.mxu0 0.0
    %987 = vmatpush1.msra.mxu0 %v958
    %988 = vmatprep.subr.mxu0 0.0
    %989 = vmatpush1.msra.mxu0 %v959
    %990 = vmatprep.subr.mxu0 0.0
    %991 = vmatpush1.msra.mxu0 %v960
    %992 = vmatprep.subr.mxu0 0.0
    %993 = vmatpush1.msra.mxu0 %v961
    %994 = vmatprep.subr.mxu0 0.0
    %995 = vmatpush1.msra.mxu0 0.0
    %996 = vmatprep.subr.mxu0 0.0
    %997 = vmatpush1.msra.mxu0 0.0
    %998 = vmatprep.subr.mxu0 0.0
    %999 = vmatpush1.msra.mxu0 0.0
    %1000 = vmatprep.subr.mxu0 0.0
    %1001 = vmatpush1.msra.mxu0 0.0
    %1002 = vmatprep.subr.mxu0 0.0
    %1003 = vmatpush1.msra.mxu0 0.0
    %1004 = vmatprep.subr.mxu0 0.0
    %1005 = vmatpush1.msra.mxu0 0.0
    %1006 = vmatprep.subr.mxu0 0.0
    %1007 = vmatpush1.msra.mxu0 0.0
    %1008 = vmatprep.subr.mxu0 0.0
    %1009 = vmatpush1.msra.mxu0 0.0
    %1010 = vmatprep.subr.mxu0 0.0
    %1011 = vmatpush1.msra.mxu0 0.0
    %1012 = vmatprep.subr.mxu0 0.0
    %1013 = vmatpush1.msra.mxu0 0.0
    %1014 = vmatprep.subr.mxu0 0.0
    %1015 = vmatpush1.msra.mxu0 0.0
    %1016 = vmatprep.subr.mxu0 0.0
    %1017 = vmatpush1.msra.mxu0 0.0
    %1018 = vmatprep.subr.mxu0 0.0
    %1019 = vmatpush1.msra.mxu0 0.0
    %1020 = vmatprep.subr.mxu0 0.0
    %1021 = vmatpush1.msra.mxu0 0.0
    %1022 = vmatprep.subr.mxu0 0.0
    %1023 = vmatpush1.msra.mxu0 0.0
    %1024 = vmatprep.subr.mxu0 0.0
    %1025 = vmatpush1.msra.mxu0 0.0
    %1026 = vmatprep.mubr.f32.mxu0 0.0
    %1027 = vmatmul.mubr.f32.gmra.mrb[0].mxu0 %v924
    %v1028 = vpop.f32.mrb[0].mxu0
    %v1029 = vadd.f32 0.0, %v1028
    %v1030 = vpop.f32.mrb[0].mxu0
    %1031 = vdwg.mxu0
    %1032 = vmatprep.subr.mxu0 0.0
    %1033 = vmatpush1.msra.mxu0 %v930
    %1034 = vmatprep.subr.mxu0 0.0
    %1035 = vmatpush1.msra.mxu0 %v931
    %1036 = vmatprep.subr.mxu0 0.0
    %1037 = vmatpush1.msra.mxu0 %v932
    %1038 = vmatprep.subr.mxu0 0.0
    %1039 = vmatpush1.msra.mxu0 %v933
    %1040 = vmatprep.subr.mxu0 0.0
    %1041 = vmatpush1.msra.mxu0 %v934
    %1042 = vmatprep.subr.mxu0 0.0
    %1043 = vmatpush1.msra.mxu0 %v935
    %1044 = vmatprep.subr.mxu0 0.0
    %1045 = vmatpush1.msra.mxu0 %v936
    %1046 = vmatprep.subr.mxu0 0.0
    %1047 = vmatpush1.msra.mxu0 %v937
    %1048 = vmatprep.subr.mxu0 0.0
    %1049 = vmatpush1.msra.mxu0 %v938
    %1050 = vmatprep.subr.mxu0 0.0
    %1051 = vmatpush1.msra.mxu0 %v939
    %1052 = vmatprep.subr.mxu0 0.0
    %1053 = vmatpush1.msra.mxu0 %v940
    %1054 = vmatprep.subr.mxu0 0.0
    %1055 = vmatpush1.msra.mxu0 %v941
    %1056 = vmatprep.subr.mxu0 0.0
    %1057 = vmatpush1.msra.mxu0 %v942
    %1058 = vmatprep.subr.mxu0 0.0
    %1059 = vmatpush1.msra.mxu0 %v943
    %1060 = vmatprep.subr.mxu0 0.0
    %1061 = vmatpush1.msra.mxu0 %v944
    %1062 = vmatprep.subr.mxu0 0.0
    %1063 = vmatpush1.msra.mxu0 %v945
    %1064 = vmatprep.subr.mxu0 0.0
    %1065 = vmatpush1.msra.mxu0 0.0
    %1066 = vmatprep.subr.mxu0 0.0
    %1067 = vmatpush1.msra.mxu0 0.0
    %1068 = vmatprep.subr.mxu0 0.0
    %1069 = vmatpush1.msra.mxu0 0.0
    %1070 = vmatprep.subr.mxu0 0.0
    %1071 = vmatpush1.msra.mxu0 0.0
    %1072 = vmatprep.subr.mxu0 0.0
    %1073 = vmatpush1.msra.mxu0 0.0
    %1074 = vmatprep.subr.mxu0 0.0
    %1075 = vmatpush1.msra.mxu0 0.0
    %1076 = vmatprep.subr.mxu0 0.0
    %1077 = vmatpush1.msra.mxu0 0.0
    %1078 = vmatprep.subr.mxu0 0.0
    %1079 = vmatpush1.msra.mxu0 0.0
    %1080 = vmatprep.subr.mxu0 0.0
    %1081 = vmatpush1.msra.mxu0 0.0
    %1082 = vmatprep.subr.mxu0 0.0
    %1083 = vmatpush1.msra.mxu0 0.0
    %1084 = vmatprep.subr.mxu0 0.0
    %1085 = vmatpush1.msra.mxu0 0.0
    %1086 = vmatprep.subr.mxu0 0.0
    %1087 = vmatpush1.msra.mxu0 0.0
    %1088 = vmatprep.subr.mxu0 0.0
    %1089 = vmatpush1.msra.mxu0 0.0
    %1090 = vmatprep.subr.mxu0 0.0
    %1091 = vmatpush1.msra.mxu0 0.0
    %1092 = vmatprep.subr.mxu0 0.0
    %1093 = vmatpush1.msra.mxu0 0.0
    %1094 = vmatprep.subr.mxu0 0.0
    %1095 = vmatpush1.msra.mxu0 0.0
    %1096 = vmatprep.mubr.f32.mxu0 0.0
    %1097 = vmatmul.mubr.f32.gmra.mrb[0].mxu0 %v929
    %v1098 = vpop.f32.mrb[0].mxu0
    %v1099 = vadd.f32 %v1029, %v1098
    %v1100 = vpop.f32.mrb[0].mxu0
    %1101 = vdwg.mxu0
    %v1102 = vld [vmem:[%s10] sm:$0x1]
    %v1104 = vlaneseq
    %v1105 = vshrl.u32 %v1104, 7
    %v1106 = vsub.s32 0, %v1105
    %v1107 = vrot.slane %v1102, %v1106
    %v1109 = vadd.f32 %v1099, %v1107
    %v1110 = vmax.f32 %v1109, 0.0
    %v1111 = vld [vmem:[%s3] sm:$0xff]
    %vm1112 = vcmask 64512
    %v1114 = vsel %vm1112, %v1111, 0
    %1116 = vmatprep.subr.mxu0 0.0
    %1117 = vmatpush1.msra.mxu0 %v1110
    %1118 = vmatprep.subr.mxu0 0.0
    %1119 = vmatpush1.msra.mxu0 0.0
    %1120 = vmatprep.subr.mxu0 0.0
    %1121 = vmatpush1.msra.mxu0 0.0
    %1122 = vmatprep.subr.mxu0 0.0
    %1123 = vmatpush1.msra.mxu0 0.0
    %1124 = vmatprep.subr.mxu0 0.0
    %1125 = vmatpush1.msra.mxu0 0.0
    %1126 = vmatprep.subr.mxu0 0.0
    %1127 = vmatpush1.msra.mxu0 0.0
    %1128 = vmatprep.subr.mxu0 0.0
    %1129 = vmatpush1.msra.mxu0 0.0
    %1130 = vmatprep.subr.mxu0 0.0
    %1131 = vmatpush1.msra.mxu0 0.0
    %1132 = vmatprep.subr.mxu0 0.0
    %1133 = vmatpush1.msra.mxu0 0.0
    %1134 = vmatprep.subr.mxu0 0.0
    %1135 = vmatpush1.msra.mxu0 0.0
    %1136 = vmatprep.subr.mxu0 0.0
    %1137 = vmatpush1.msra.mxu0 0.0
    %1138 = vmatprep.subr.mxu0 0.0
    %1139 = vmatpush1.msra.mxu0 0.0
    %1140 = vmatprep.subr.mxu0 0.0
    %1141 = vmatpush1.msra.mxu0 0.0
    %1142 = vmatprep.subr.mxu0 0.0
    %1143 = vmatpush1.msra.mxu0 0.0
    %1144 = vmatprep.subr.mxu0 0.0
    %1145 = vmatpush1.msra.mxu0 0.0
    %1146 = vmatprep.subr.mxu0 0.0
    %1147 = vmatpush1.msra.mxu0 0.0
    %1148 = vmatprep.subr.mxu0 0.0
    %1149 = vmatpush1.msra.mxu0 0.0
    %1150 = vmatprep.subr.mxu0 0.0
    %1151 = vmatpush1.msra.mxu0 0.0
    %1152 = vmatprep.subr.mxu0 0.0
    %1153 = vmatpush1.msra.mxu0 0.0
    %1154 = vmatprep.subr.mxu0 0.0
    %1155 = vmatpush1.msra.mxu0 0.0
    %1156 = vmatprep.subr.mxu0 0.0
    %1157 = vmatpush1.msra.mxu0 0.0
    %1158 = vmatprep.subr.mxu0 0.0
    %1159 = vmatpush1.msra.mxu0 0.0
    %1160 = vmatprep.subr.mxu0 0.0
    %1161 = vmatpush1.msra.mxu0 0.0
    %1162 = vmatprep.subr.mxu0 0.0
    %1163 = vmatpush1.msra.mxu0 0.0
    %1164 = vmatprep.subr.mxu0 0.0
    %1165 = vmatpush1.msra.mxu0 0.0
    %1166 = vmatprep.subr.mxu0 0.0
    %1167 = vmatpush1.msra.mxu0 0.0
    %1168 = vmatprep.subr.mxu0 0.0
    %1169 = vmatpush1.msra.mxu0 0.0
    %1170 = vmatprep.subr.mxu0 0.0
    %1171 = vmatpush1.msra.mxu0 0.0
    %1172 = vmatprep.subr.mxu0 0.0
    %1173 = vmatpush1.msra.mxu0 0.0
    %1174 = vmatprep.subr.mxu0 0.0
    %1175 = vmatpush1.msra.mxu0 0.0
    %1176 = vmatprep.subr.mxu0 0.0
    %1177 = vmatpush1.msra.mxu0 0.0
    %1178 = vmatprep.subr.mxu0 0.0
    %1179 = vmatpush1.msra.mxu0 0.0
    %1180 = vmatprep.mubr.f32.mxu0 0.0
    %1181 = vmatmul.mubr.f32.gmra.mrb[0].mxu0 %v1114
    %v1182 = vpop.f32.mrb[0].mxu0
    %v1183 = vadd.f32 0.0, %v1182
    %v1184 = vpop.f32.mrb[0].mxu0
    %1185 = vdwg.mxu0
    %v1186 = vld [vmem:[#allocation22] sm:$0xff]
    %v1187 = vld [vmem:[#allocation22 + $0x8] sm:$0xff]
    %v1188 = vld [vmem:[#allocation22 + $0x10] sm:$0xff]
    %v1189 = vld [vmem:[#allocation22 + $0x18] sm:$0xff]
    %v1190 = vld [vmem:[#allocation22 + $0x20] sm:$0xff]
    %v1191 = vld [vmem:[#allocation22 + $0x28] sm:$0xff]
    %v1192 = vld [vmem:[#allocation22 + $0x30] sm:$0xff]
    %v1193 = vld [vmem:[#allocation22 + $0x38] sm:$0xff]
    %v1194 = vld [vmem:[#allocation22 + $0x40] sm:$0xff]
    %v1195 = vld [vmem:[#allocation22 + $0x48] sm:$0xff]
    %v1196 = vld [vmem:[#allocation22 + $0x50] sm:$0xff]
    %v1197 = vld [vmem:[#allocation22 + $0x58] sm:$0xff]
    %v1198 = vld [vmem:[#allocation22 + $0x60] sm:$0xff]
    %v1199 = vld [vmem:[#allocation22 + $0x68] sm:$0xff]
    %v1200 = vld [vmem:[#allocation22 + $0x70] sm:$0xff]
    %v1201 = vld [vmem:[#allocation22 + $0x78] sm:$0xff]
    %v1202 = vld [vmem:[%s12] sm:$0x1]
    %v1204 = vlaneseq
    %v1205 = vshrl.u32 %v1204, 7
    %v1206 = vsub.s32 0, %v1205
    %v1207 = vrot.slane %v1202, %v1206
    %1209 = vmatprep.subr.mxu0 0.0
    %1210 = vmatpush1.msra.mxu0 %v1186
    %1211 = vmatprep.subr.mxu0 0.0
    %1212 = vmatpush1.msra.mxu0 %v1187
    %1213 = vmatprep.subr.mxu0 0.0
    %1214 = vmatpush1.msra.mxu0 %v1188
    %1215 = vmatprep.subr.mxu0 0.0
    %1216 = vmatpush1.msra.mxu0 %v1189
    %1217 = vmatprep.subr.mxu0 0.0
    %1218 = vmatpush1.msra.mxu0 %v1190
    %1219 = vmatprep.subr.mxu0 0.0
    %1220 = vmatpush1.msra.mxu0 %v1191
    %1221 = vmatprep.subr.mxu0 0.0
    %1222 = vmatpush1.msra.mxu0 %v1192
    %1223 = vmatprep.subr.mxu0 0.0
    %1224 = vmatpush1.msra.mxu0 %v1193
    %1225 = vmatprep.subr.mxu0 0.0
    %1226 = vmatpush1.msra.mxu0 %v1194
    %1227 = vmatprep.subr.mxu0 0.0
    %1228 = vmatpush1.msra.mxu0 %v1195
    %1229 = vmatprep.subr.mxu0 0.0
    %1230 = vmatpush1.msra.mxu0 %v1196
    %1231 = vmatprep.subr.mxu0 0.0
    %1232 = vmatpush1.msra.mxu0 %v1197
    %1233 = vmatprep.subr.mxu0 0.0
    %1234 = vmatpush1.msra.mxu0 %v1198
    %1235 = vmatprep.subr.mxu0 0.0
    %1236 = vmatpush1.msra.mxu0 %v1199
    %1237 = vmatprep.subr.mxu0 0.0
    %1238 = vmatpush1.msra.mxu0 %v1200
    %1239 = vmatprep.subr.mxu0 0.0
    %1240 = vmatpush1.msra.mxu0 %v1201
    %1241 = vmatprep.subr.mxu0 0.0
    %1242 = vmatpush1.msra.mxu0 0.0
    %1243 = vmatprep.subr.mxu0 0.0
    %1244 = vmatpush1.msra.mxu0 0.0
    %1245 = vmatprep.subr.mxu0 0.0
    %1246 = vmatpush1.msra.mxu0 0.0
    %1247 = vmatprep.subr.mxu0 0.0
    %1248 = vmatpush1.msra.mxu0 0.0
    %1249 = vmatprep.subr.mxu0 0.0
    %1250 = vmatpush1.msra.mxu0 0.0
    %1251 = vmatprep.subr.mxu0 0.0
    %1252 = vmatpush1.msra.mxu0 0.0
    %1253 = vmatprep.subr.mxu0 0.0
    %1254 = vmatpush1.msra.mxu0 0.0
    %1255 = vmatprep.subr.mxu0 0.0
    %1256 = vmatpush1.msra.mxu0 0.0
    %1257 = vmatprep.subr.mxu0 0.0
    %1258 = vmatpush1.msra.mxu0 0.0
    %1259 = vmatprep.subr.mxu0 0.0
    %1260 = vmatpush1.msra.mxu0 0.0
    %1261 = vmatprep.subr.mxu0 0.0
    %1262 = vmatpush1.msra.mxu0 0.0
    %1263 = vmatprep.subr.mxu0 0.0
    %1264 = vmatpush1.msra.mxu0 0.0
    %1265 = vmatprep.subr.mxu0 0.0
    %1266 = vmatpush1.msra.mxu0 0.0
    %1267 = vmatprep.subr.mxu0 0.0
    %1268 = vmatpush1.msra.mxu0 0.0
    %1269 = vmatprep.subr.mxu0 0.0
    %1270 = vmatpush1.msra.mxu0 0.0
    %1271 = vmatprep.subr.mxu0 0.0
    %1272 = vmatpush1.msra.mxu0 0.0
    %1273 = vmatprep.mubr.f32.mxu0 0.0
    %1274 = vmatmul.mubr.f32.gmra.mrb[0].mxu0 %v1183
    %v1275 = vpop.f32.mrb[0].mxu0
    %v1276 = vadd.f32 %v1207, %v1275
    %v1277 = vpop.f32.mrb[0].mxu0
    %1278 = vdwg.mxu0
    %v1279 = vmax.f32 %v1276, 0.0
    %1280 = vst [vmem:[#allocation24] sm:$0xff] %v1279
    // Predicated region
    $region108: #{tpu_custom_call.1} parent=1 // pred_check
      _
    $region109: #{tpu_custom_call.1} parent=1 // pred_check_branch
      %1282 = sbr.rel (0) target = $region111
    $region110: #{tpu_custom_call.1} parent=1 // pred_region
      %s1284 = ssub.s32 128, 128
      %1285 = vsyncadd [#allocation8], %s1284
      %s1287 = sshll.u32 [#allocation24], 4
      %s1288 = int_to_ptr.vmem [resolvable:$true] %s1287
      %1290 = dma.vmem_to_hbm [thread:$0]  %s1288, 128, %s13, [#allocation8]
    $region111: #{tpu_custom_call.1} parent=1 // pred_fallthru
      _
    // Predicated region
    $region112: #{tpu_custom_call.1} parent=1 // pred_check
      _
    $region113: #{tpu_custom_call.1} parent=1 // pred_check_branch
      %1292 = sbr.rel (0) target = $region115
    $region114: #{tpu_custom_call.1} parent=1 // pred_region
      %1293 = dma.done [#allocation8], 128
    $region115: #{tpu_custom_call.1} parent=1 // pred_fallthru
      _
    %1294 = vsyncpa [#allocation7], 1
    %1295 = vsyncpa [#allocation11], 1
    %1296 = vsyncpa [#allocation17], 1
    %1297 = vsyncpa [#allocation20], 1
    %1298 = vsyncpa [#allocation23], 1
    %1299 = vsyncpa [#allocation8], 1
    %1300 = vsyncpa [#allocation9], 1
    %1301 = vsyncpa [#allocation15], 1

</llo_original>
